<compile_context>
chip_gen: v7x
topology: tpu7x:2x2x1
jax: 0.10.0
libtpu: 0.0.40
codegen_flags: <defaults>
</compile_context>

<pallas_src>
import math

import jax
import jax.numpy as jnp
from jax import lax
from jax.experimental import pallas as pl
from jax.experimental.pallas import tpu as pltpu

B, S, D = 2, 8, 32
HEADS = 4
HEAD_DIM = D // HEADS
MLP_DIM = int(D * 4.0)
EPS = 1e-5


def _layernorm(v, gamma, beta):
    mu = jnp.mean(v, axis=-1, keepdims=True)
    var = jnp.mean((v - mu) ** 2, axis=-1, keepdims=True)
    return (v - mu) * lax.rsqrt(var + EPS) * gamma + beta


def _gelu_exact(v):
    # nn.GELU() default is the exact erf-based GELU.
    return 0.5 * v * (1.0 + lax.erf(v / math.sqrt(2.0)))


def encoder_block_kernel(
    x_ref,        # (B*S, D)
    wqkv_ref,     # (D, 3D)   fused [Wq^T | Wk^T | Wv^T]
    wo_ref,       # (D, D)
    w1_ref,       # (D, MLP_DIM)
    w2_ref,       # (MLP_DIM, D)
    vecs_ref,     # (9, D)    packed [g1, be1, bq, bk, bv, bo, g2, be2, bm2]
    bm1_ref,      # (1, MLP_DIM)
    o_ref,        # (B*S, D)
):
    x = x_ref[...]                                  # (B*S, D)
    vecs = vecs_ref[...]                            # (9, D)
    g1, be1 = vecs[0:1], vecs[1:2]
    bq, bk, bv = vecs[2:3], vecs[3:4], vecs[4:5]
    bo = vecs[5:6]
    g2, be2 = vecs[6:7], vecs[7:8]
    bm2 = vecs[8:9]

    # ---- attention branch -------------------------------------------------
    n1 = _layernorm(x, g1, be1)                     # (B*S, D)

    qkv = jnp.dot(n1, wqkv_ref[...], preferred_element_type=jnp.float32)  # (B*S, 3D)
    q = (qkv[:, 0:D] + bq).reshape(B, S, D)
    k = (qkv[:, D:2 * D] + bk).reshape(B, S, D)
    v = (qkv[:, 2 * D:3 * D] + bv).reshape(B, S, D)

    scale = 1.0 / math.sqrt(HEAD_DIM)
    head_outs = []
    for h in range(HEADS):                          # static (unrolled) head loop
        sl = slice(h * HEAD_DIM, (h + 1) * HEAD_DIM)
        qh, kh, vh = q[:, :, sl], k[:, :, sl], v[:, :, sl]       # (B, S, hd)
        # batched over B; the k-transpose is folded into the einsum dnums.
        s = jnp.einsum("bqd,bkd->bqk", qh, kh,
                       preferred_element_type=jnp.float32) * scale   # (B, S, S)
        m = jnp.max(s, axis=-1, keepdims=True)
        e = jnp.exp(s - m)
        l = jnp.sum(e, axis=-1, keepdims=True)
        p = e * pl.reciprocal(l, approx=True)       # softmax (EUP reciprocal)
        # TODO(synk): attention dropout (p=0.1) omitted -> eval-mode semantics.
        head_outs.append(jnp.einsum("bqk,bkd->bqd", p, vh,
                                    preferred_element_type=jnp.float32))
    attn = jnp.concatenate(head_outs, axis=-1).reshape(B * S, D)     # (B*S, D)

    attn = jnp.dot(attn, wo_ref[...], preferred_element_type=jnp.float32) + bo
    x1 = x + attn                                   # residual 1

    # ---- MLP branch --------------------------------------------------------
    n2 = _layernorm(x1, g2, be2)
    h1 = jnp.dot(n2, w1_ref[...], preferred_element_type=jnp.float32) + bm1_ref[...]
    h1 = _gelu_exact(h1)
    h2 = jnp.dot(h1, w2_ref[...], preferred_element_type=jnp.float32) + bm2

    o_ref[...] = (x1 + h2).astype(o_ref.dtype)      # residual 2


def transformer_encoder_block(x, params):
    """x: (B, S, D) float32.  params: dict of pre-transposed weights."""
    # Fuse QKV weights and pack the small parameter vectors (wrapper-side, XLA).
    wqkv_t = jnp.concatenate(
        [params["wq_t"], params["wk_t"], params["wv_t"]], axis=1)   # (D, 3D)
    vecs = jnp.concatenate(
        [params["g1"], params["be1"],
         params["bq"], params["bk"], params["bv"],
         params["bo"], params["g2"], params["be2"], params["bm2"]], axis=0)  # (9, D)

    x2d = x.reshape(B * S, D)

    full = lambda shape: pl.BlockSpec(shape, lambda i: (0, 0))
    in_specs = [
        full((B * S, D)),           # x (all batches in one step)
        full((D, 3 * D)),           # fused Wqkv^T
        full((D, D)),               # Wo^T
        full((D, MLP_DIM)),         # W1^T
        full((MLP_DIM, D)),         # W2^T
        full((9, D)),               # packed (1,D) vectors
        full((1, MLP_DIM)),         # b1
    ]
    out_spec = full((B * S, D))
    # TODO(synk): on v5e a lane-dense (B, S*D) output view would avoid masked
    # stores; skipped here since the in-kernel relayout is not worth it at D=32.

    fn = pl.pallas_call(
        encoder_block_kernel,
        out_shape=jax.ShapeDtypeStruct((B * S, D), x.dtype),
        grid_spec=pltpu.PrefetchScalarGridSpec(
            num_scalar_prefetch=0,
            grid=(1,),                              # single grid step
            in_specs=in_specs,
            out_specs=out_spec,
        ),
        compiler_params=pltpu.CompilerParams(
            dimension_semantics=("arbitrary",)),
    )
    out2d = fn(x2d, wqkv_t, params["wo_t"], params["w1_t"], params["w2_t"],
               vecs, params["bm1"])
    return out2d.reshape(B, S, D)


def reference_block(x, p):
    """Pure-JAX reference mirroring the PyTorch forward (eval mode)."""
    def ln(v, g, b):
        mu = jnp.mean(v, axis=-1, keepdims=True)
        var = jnp.mean((v - mu) ** 2, axis=-1, keepdims=True)
        return (v - mu) * lax.rsqrt(var + EPS) * g + b

    n1 = ln(x, p["g1"][0], p["be1"][0])
    q = n1 @ p["wq_t"] + p["bq"][0]
    k = n1 @ p["wk_t"] + p["bk"][0]
    v = n1 @ p["wv_t"] + p["bv"][0]
    qh = q.reshape(B, S, HEADS, HEAD_DIM).transpose(0, 2, 1, 3)
    kh = k.reshape(B, S, HEADS, HEAD_DIM).transpose(0, 2, 1, 3)
    vh = v.reshape(B, S, HEADS, HEAD_DIM).transpose(0, 2, 1, 3)
    scores = jnp.einsum("bhqd,bhkd->bhqk", qh, kh) / math.sqrt(HEAD_DIM)
    probs = jax.nn.softmax(scores, axis=-1)
    attn = jnp.einsum("bhqk,bhkd->bhqd", probs, vh)
    attn = attn.transpose(0, 2, 1, 3).reshape(B, S, D)
    attn = attn @ p["wo_t"] + p["bo"][0]
    x1 = x + attn
    n2 = ln(x1, p["g2"][0], p["be2"][0])
    u = n2 @ p["w1_t"] + p["bm1"][0]
    h = 0.5 * u * (1.0 + lax.erf(u / math.sqrt(2.0)))
    return x1 + h @ p["w2_t"] + p["bm2"][0]


def make_params(key):
    ks = jax.random.split(key, 8)
    std = 0.02
    wq = jax.random.normal(ks[0], (D, D), jnp.float32) * std
    wk = jax.random.normal(ks[1], (D, D), jnp.float32) * std
    wv = jax.random.normal(ks[2], (D, D), jnp.float32) * std
    wo = jax.random.normal(ks[3], (D, D), jnp.float32) * std
    w1 = jax.random.normal(ks[4], (MLP_DIM, D), jnp.float32) * std   # nn.Linear(D, 4D).weight
    w2 = jax.random.normal(ks[5], (D, MLP_DIM), jnp.float32) * std   # nn.Linear(4D, D).weight
    return {
        "g1": jnp.ones((1, D), jnp.float32),
        "be1": jnp.zeros((1, D), jnp.float32),
        "g2": jnp.ones((1, D), jnp.float32),
        "be2": jnp.zeros((1, D), jnp.float32),
        "wq_t": wq.T, "wk_t": wk.T, "wv_t": wv.T,
        "bq": jax.random.normal(ks[6], (1, D), jnp.float32) * std,
        "bk": jnp.zeros((1, D), jnp.float32),
        "bv": jax.random.normal(ks[7], (1, D), jnp.float32) * std,
        "wo_t": wo.T,
        "bo": jnp.zeros((1, D), jnp.float32),
        "w1_t": w1.T,
        "bm1": jnp.full((1, MLP_DIM), 0.01, jnp.float32),
        "w2_t": w2.T,
        "bm2": jnp.full((1, D), -0.01, jnp.float32),
    }


if __name__ == "__main__":
    key = jax.random.PRNGKey(0)
    kx, kp = jax.random.split(key)
    x = jax.random.normal(kx, (B, S, D), jnp.float32)
    params = make_params(kp)

    out = transformer_encoder_block(x, params)
    out = jax.block_until_ready(out)

    ref = reference_block(x, params)
    assert out.shape == (B, S, D)
    # Tolerance slightly loosened vs 1e-4 because of the approximate (EUP)
    # reciprocal in the softmax denominator; observed error is far smaller.
    assert jnp.allclose(out, ref, atol=1e-3, rtol=1e-3), (
        float(jnp.max(jnp.abs(out - ref))))

    print("KERNEL_OK")
</pallas_src>

<mosaic_0001>
module attributes {stable_mosaic.version = 11 : i64} {
  func.func @encoder_block_kernel(%arg0: i32, %arg1: memref<16x32xf32, #tpu.memory_space<vmem>>, %arg2: memref<32x96xf32, #tpu.memory_space<vmem>>, %arg3: memref<32x32xf32, #tpu.memory_space<vmem>>, %arg4: memref<32x128xf32, #tpu.memory_space<vmem>>, %arg5: memref<128x32xf32, #tpu.memory_space<vmem>>, %arg6: memref<9x32xf32, #tpu.memory_space<vmem>>, %arg7: memref<1x128xf32, #tpu.memory_space<vmem>>, %arg8: memref<16x32xf32, #tpu.memory_space<vmem>>) attributes {dimension_semantics = [#tpu.dimension_semantics<arbitrary>], iteration_bounds = array<i64: 1>, scalar_prefetch = 0 : i64, scratch_operands = 0 : i64, tpu.core_type = #tpu.core_type<tc>, window_params = [{pipeline_mode = #tpu.pipeline_mode<synchronous>, transform_indices = @transform_0, window_bounds = array<i64: 16, 32>}, {pipeline_mode = #tpu.pipeline_mode<synchronous>, transform_indices = @transform_1, window_bounds = array<i64: 32, 96>}, {pipeline_mode = #tpu.pipeline_mode<synchronous>, transform_indices = @transform_2, window_bounds = array<i64: 32, 32>}, {pipeline_mode = #tpu.pipeline_mode<synchronous>, transform_indices = @transform_3, window_bounds = array<i64: 32, 128>}, {pipeline_mode = #tpu.pipeline_mode<synchronous>, transform_indices = @transform_4, window_bounds = array<i64: 128, 32>}, {pipeline_mode = #tpu.pipeline_mode<synchronous>, transform_indices = @transform_5, window_bounds = array<i64: 9, 32>}, {pipeline_mode = #tpu.pipeline_mode<synchronous>, transform_indices = @transform_6, window_bounds = array<i64: 1, 128>}, {pipeline_mode = #tpu.pipeline_mode<synchronous>, transform_indices = @transform_7, window_bounds = array<i64: 16, 32>}]} {
    %c0 = arith.constant 0 : index
    %c0_0 = arith.constant 0 : index
    %0 = vector.load %arg1[%c0, %c0_0] : memref<16x32xf32, #tpu.memory_space<vmem>>, vector<16x32xf32>
    %c0_1 = arith.constant 0 : index
    %c0_2 = arith.constant 0 : index
    %1 = vector.load %arg6[%c0_1, %c0_2] : memref<9x32xf32, #tpu.memory_space<vmem>>, vector<9x32xf32>
    %2 = vector.extract_strided_slice %1 {offsets = [0, 0], sizes = [1, 32], strides = [1, 1]} : vector<9x32xf32> to vector<1x32xf32>
    %3 = vector.extract_strided_slice %1 {offsets = [1, 0], sizes = [1, 32], strides = [1, 1]} : vector<9x32xf32> to vector<1x32xf32>
    %4 = vector.extract_strided_slice %1 {offsets = [2, 0], sizes = [1, 32], strides = [1, 1]} : vector<9x32xf32> to vector<1x32xf32>
    %5 = vector.extract_strided_slice %1 {offsets = [3, 0], sizes = [1, 32], strides = [1, 1]} : vector<9x32xf32> to vector<1x32xf32>
    %6 = vector.extract_strided_slice %1 {offsets = [4, 0], sizes = [1, 32], strides = [1, 1]} : vector<9x32xf32> to vector<1x32xf32>
    %7 = vector.extract_strided_slice %1 {offsets = [5, 0], sizes = [1, 32], strides = [1, 1]} : vector<9x32xf32> to vector<1x32xf32>
    %8 = vector.extract_strided_slice %1 {offsets = [6, 0], sizes = [1, 32], strides = [1, 1]} : vector<9x32xf32> to vector<1x32xf32>
    %9 = vector.extract_strided_slice %1 {offsets = [7, 0], sizes = [1, 32], strides = [1, 1]} : vector<9x32xf32> to vector<1x32xf32>
    %10 = vector.extract_strided_slice %1 {offsets = [8, 0], sizes = [1, 32], strides = [1, 1]} : vector<9x32xf32> to vector<1x32xf32>
    %cst = arith.constant dense<0.000000e+00> : vector<16xf32>
    %11 = vector.multi_reduction <add>, %0, %cst [1] : vector<16x32xf32> to vector<16xf32>
    %12 = vector.shape_cast %11 : vector<16xf32> to vector<16x1xf32>
    %cst_3 = arith.constant 3.200000e+01 : f32
    %13 = vector.broadcast %cst_3 : f32 to vector<16x1xf32>
    %14 = arith.divf %12, %13 : vector<16x1xf32>
    %15 = vector.broadcast %14 : vector<16x1xf32> to vector<16x32xf32>
    %16 = arith.subf %0, %15 : vector<16x32xf32>
    %17 = arith.mulf %16, %16 : vector<16x32xf32>
    %cst_4 = arith.constant dense<0.000000e+00> : vector<16xf32>
    %18 = vector.multi_reduction <add>, %17, %cst_4 [1] : vector<16x32xf32> to vector<16xf32>
    %19 = vector.shape_cast %18 : vector<16xf32> to vector<16x1xf32>
    %cst_5 = arith.constant 3.200000e+01 : f32
    %20 = vector.broadcast %cst_5 : f32 to vector<16x1xf32>
    %21 = arith.divf %19, %20 : vector<16x1xf32>
    %22 = vector.broadcast %14 : vector<16x1xf32> to vector<16x32xf32>
    %23 = arith.subf %0, %22 : vector<16x32xf32>
    %cst_6 = arith.constant 9.99999974E-6 : f32
    %24 = vector.broadcast %cst_6 : f32 to vector<16x1xf32>
    %25 = arith.addf %21, %24 : vector<16x1xf32>
    %26 = math.rsqrt %25 : vector<16x1xf32>
    %27 = vector.broadcast %26 : vector<16x1xf32> to vector<16x32xf32>
    %28 = arith.mulf %23, %27 : vector<16x32xf32>
    %29 = vector.broadcast %2 : vector<1x32xf32> to vector<16x32xf32>
    %30 = arith.mulf %28, %29 : vector<16x32xf32>
    %31 = vector.broadcast %3 : vector<1x32xf32> to vector<16x32xf32>
    %32 = arith.addf %30, %31 : vector<16x32xf32>
    %c0_7 = arith.constant 0 : index
    %c0_8 = arith.constant 0 : index
    %33 = vector.load %arg2[%c0_7, %c0_8] : memref<32x96xf32, #tpu.memory_space<vmem>>, vector<32x96xf32>
    %cst_9 = arith.constant dense<0.000000e+00> : vector<16x96xf32>
    %34 = tpu.matmul %32, %33, %cst_9 {dimension_numbers = #tpu.dot_dimension_numbers<[1], [0], [0], [1], [0, 0, 1, 1], [], []>} : vector<16x32xf32>, vector<32x96xf32>, vector<16x96xf32> -> vector<16x96xf32>
    %35 = vector.extract_strided_slice %34 {offsets = [0, 0], sizes = [16, 32], strides = [1, 1]} : vector<16x96xf32> to vector<16x32xf32>
    %36 = vector.broadcast %4 : vector<1x32xf32> to vector<16x32xf32>
    %37 = arith.addf %35, %36 : vector<16x32xf32>
    %38 = vector.shape_cast %37 : vector<16x32xf32> to vector<2x8x32xf32>
    %39 = vector.extract_strided_slice %34 {offsets = [0, 32], sizes = [16, 32], strides = [1, 1]} : vector<16x96xf32> to vector<16x32xf32>
    %40 = vector.broadcast %5 : vector<1x32xf32> to vector<16x32xf32>
    %41 = arith.addf %39, %40 : vector<16x32xf32>
    %42 = vector.shape_cast %41 : vector<16x32xf32> to vector<2x8x32xf32>
    %43 = vector.extract_strided_slice %34 {offsets = [0, 64], sizes = [16, 32], strides = [1, 1]} : vector<16x96xf32> to vector<16x32xf32>
    %44 = vector.broadcast %6 : vector<1x32xf32> to vector<16x32xf32>
    %45 = arith.addf %43, %44 : vector<16x32xf32>
    %46 = vector.shape_cast %45 : vector<16x32xf32> to vector<2x8x32xf32>
    %47 = vector.extract_strided_slice %38 {offsets = [0, 0, 0], sizes = [2, 8, 8], strides = [1, 1, 1]} : vector<2x8x32xf32> to vector<2x8x8xf32>
    %48 = vector.extract_strided_slice %42 {offsets = [0, 0, 0], sizes = [2, 8, 8], strides = [1, 1, 1]} : vector<2x8x32xf32> to vector<2x8x8xf32>
    %49 = vector.extract_strided_slice %46 {offsets = [0, 0, 0], sizes = [2, 8, 8], strides = [1, 1, 1]} : vector<2x8x32xf32> to vector<2x8x8xf32>
    "tpu.trace_start"() <{level = 10 : i32, message = "bqd,bkd->bqk"}> : () -> ()
    %cst_10 = arith.constant dense<0.000000e+00> : vector<2x8x8xf32>
    %50 = tpu.matmul %47, %48, %cst_10 {dimension_numbers = #tpu.dot_dimension_numbers<[2], [2], [1], [1], [0, 0, 0, 1, 1, 1], [0], [0]>} : vector<2x8x8xf32>, vector<2x8x8xf32>, vector<2x8x8xf32> -> vector<2x8x8xf32>
    "tpu.trace_stop"() : () -> ()
    %cst_11 = arith.constant 0.353553385 : f32
    %51 = vector.broadcast %cst_11 : f32 to vector<2x8x8xf32>
    %52 = arith.mulf %50, %51 : vector<2x8x8xf32>
    %cst_12 = arith.constant dense<0xFF800000> : vector<2x8xf32>
    %53 = vector.multi_reduction <maximumf>, %52, %cst_12 [2] : vector<2x8x8xf32> to vector<2x8xf32>
    %54 = vector.shape_cast %53 : vector<2x8xf32> to vector<2x8x1xf32>
    %55 = vector.broadcast %54 : vector<2x8x1xf32> to vector<2x8x8xf32>
    %56 = arith.subf %52, %55 : vector<2x8x8xf32>
    %57 = math.exp %56 : vector<2x8x8xf32>
    %cst_13 = arith.constant dense<0.000000e+00> : vector<2x8xf32>
    %58 = vector.multi_reduction <add>, %57, %cst_13 [2] : vector<2x8x8xf32> to vector<2x8xf32>
    %59 = vector.shape_cast %58 : vector<2x8xf32> to vector<2x8x1xf32>
    %60 = tpu.reciprocal %59 {approx = true} : vector<2x8x1xf32> -> vector<2x8x1xf32>
    %61 = vector.broadcast %60 : vector<2x8x1xf32> to vector<2x8x8xf32>
    %62 = arith.mulf %57, %61 : vector<2x8x8xf32>
    "tpu.trace_start"() <{level = 10 : i32, message = "bqk,bkd->bqd"}> : () -> ()
    %cst_14 = arith.constant dense<0.000000e+00> : vector<2x8x8xf32>
    %63 = tpu.matmul %62, %49, %cst_14 {dimension_numbers = #tpu.dot_dimension_numbers<[2], [1], [1], [2], [0, 0, 0, 1, 1, 2], [0], [0]>} : vector<2x8x8xf32>, vector<2x8x8xf32>, vector<2x8x8xf32> -> vector<2x8x8xf32>
    "tpu.trace_stop"() : () -> ()
    %64 = vector.extract_strided_slice %38 {offsets = [0, 0, 8], sizes = [2, 8, 8], strides = [1, 1, 1]} : vector<2x8x32xf32> to vector<2x8x8xf32>
    %65 = vector.extract_strided_slice %42 {offsets = [0, 0, 8], sizes = [2, 8, 8], strides = [1, 1, 1]} : vector<2x8x32xf32> to vector<2x8x8xf32>
    %66 = vector.extract_strided_slice %46 {offsets = [0, 0, 8], sizes = [2, 8, 8], strides = [1, 1, 1]} : vector<2x8x32xf32> to vector<2x8x8xf32>
    "tpu.trace_start"() <{level = 10 : i32, message = "bqd,bkd->bqk"}> : () -> ()
    %cst_15 = arith.constant dense<0.000000e+00> : vector<2x8x8xf32>
    %67 = tpu.matmul %64, %65, %cst_15 {dimension_numbers = #tpu.dot_dimension_numbers<[2], [2], [1], [1], [0, 0, 0, 1, 1, 1], [0], [0]>} : vector<2x8x8xf32>, vector<2x8x8xf32>, vector<2x8x8xf32> -> vector<2x8x8xf32>
    "tpu.trace_stop"() : () -> ()
    %cst_16 = arith.constant 0.353553385 : f32
    %68 = vector.broadcast %cst_16 : f32 to vector<2x8x8xf32>
    %69 = arith.mulf %67, %68 : vector<2x8x8xf32>
    %cst_17 = arith.constant dense<0xFF800000> : vector<2x8xf32>
    %70 = vector.multi_reduction <maximumf>, %69, %cst_17 [2] : vector<2x8x8xf32> to vector<2x8xf32>
    %71 = vector.shape_cast %70 : vector<2x8xf32> to vector<2x8x1xf32>
    %72 = vector.broadcast %71 : vector<2x8x1xf32> to vector<2x8x8xf32>
    %73 = arith.subf %69, %72 : vector<2x8x8xf32>
    %74 = math.exp %73 : vector<2x8x8xf32>
    %cst_18 = arith.constant dense<0.000000e+00> : vector<2x8xf32>
    %75 = vector.multi_reduction <add>, %74, %cst_18 [2] : vector<2x8x8xf32> to vector<2x8xf32>
    %76 = vector.shape_cast %75 : vector<2x8xf32> to vector<2x8x1xf32>
    %77 = tpu.reciprocal %76 {approx = true} : vector<2x8x1xf32> -> vector<2x8x1xf32>
    %78 = vector.broadcast %77 : vector<2x8x1xf32> to vector<2x8x8xf32>
    %79 = arith.mulf %74, %78 : vector<2x8x8xf32>
    "tpu.trace_start"() <{level = 10 : i32, message = "bqk,bkd->bqd"}> : () -> ()
    %cst_19 = arith.constant dense<0.000000e+00> : vector<2x8x8xf32>
    %80 = tpu.matmul %79, %66, %cst_19 {dimension_numbers = #tpu.dot_dimension_numbers<[2], [1], [1], [2], [0, 0, 0, 1, 1, 2], [0], [0]>} : vector<2x8x8xf32>, vector<2x8x8xf32>, vector<2x8x8xf32> -> vector<2x8x8xf32>
    "tpu.trace_stop"() : () -> ()
    %81 = vector.extract_strided_slice %38 {offsets = [0, 0, 16], sizes = [2, 8, 8], strides = [1, 1, 1]} : vector<2x8x32xf32> to vector<2x8x8xf32>
    %82 = vector.extract_strided_slice %42 {offsets = [0, 0, 16], sizes = [2, 8, 8], strides = [1, 1, 1]} : vector<2x8x32xf32> to vector<2x8x8xf32>
    %83 = vector.extract_strided_slice %46 {offsets = [0, 0, 16], sizes = [2, 8, 8], strides = [1, 1, 1]} : vector<2x8x32xf32> to vector<2x8x8xf32>
    "tpu.trace_start"() <{level = 10 : i32, message = "bqd,bkd->bqk"}> : () -> ()
    %cst_20 = arith.constant dense<0.000000e+00> : vector<2x8x8xf32>
    %84 = tpu.matmul %81, %82, %cst_20 {dimension_numbers = #tpu.dot_dimension_numbers<[2], [2], [1], [1], [0, 0, 0, 1, 1, 1], [0], [0]>} : vector<2x8x8xf32>, vector<2x8x8xf32>, vector<2x8x8xf32> -> vector<2x8x8xf32>
    "tpu.trace_stop"() : () -> ()
    %cst_21 = arith.constant 0.353553385 : f32
    %85 = vector.broadcast %cst_21 : f32 to vector<2x8x8xf32>
    %86 = arith.mulf %84, %85 : vector<2x8x8xf32>
    %cst_22 = arith.constant dense<0xFF800000> : vector<2x8xf32>
    %87 = vector.multi_reduction <maximumf>, %86, %cst_22 [2] : vector<2x8x8xf32> to vector<2x8xf32>
    %88 = vector.shape_cast %87 : vector<2x8xf32> to vector<2x8x1xf32>
    %89 = vector.broadcast %88 : vector<2x8x1xf32> to vector<2x8x8xf32>
    %90 = arith.subf %86, %89 : vector<2x8x8xf32>
    %91 = math.exp %90 : vector<2x8x8xf32>
    %cst_23 = arith.constant dense<0.000000e+00> : vector<2x8xf32>
    %92 = vector.multi_reduction <add>, %91, %cst_23 [2] : vector<2x8x8xf32> to vector<2x8xf32>
    %93 = vector.shape_cast %92 : vector<2x8xf32> to vector<2x8x1xf32>
    %94 = tpu.reciprocal %93 {approx = true} : vector<2x8x1xf32> -> vector<2x8x1xf32>
    %95 = vector.broadcast %94 : vector<2x8x1xf32> to vector<2x8x8xf32>
    %96 = arith.mulf %91, %95 : vector<2x8x8xf32>
    "tpu.trace_start"() <{level = 10 : i32, message = "bqk,bkd->bqd"}> : () -> ()
    %cst_24 = arith.constant dense<0.000000e+00> : vector<2x8x8xf32>
    %97 = tpu.matmul %96, %83, %cst_24 {dimension_numbers = #tpu.dot_dimension_numbers<[2], [1], [1], [2], [0, 0, 0, 1, 1, 2], [0], [0]>} : vector<2x8x8xf32>, vector<2x8x8xf32>, vector<2x8x8xf32> -> vector<2x8x8xf32>
    "tpu.trace_stop"() : () -> ()
    %98 = vector.extract_strided_slice %38 {offsets = [0, 0, 24], sizes = [2, 8, 8], strides = [1, 1, 1]} : vector<2x8x32xf32> to vector<2x8x8xf32>
    %99 = vector.extract_strided_slice %42 {offsets = [0, 0, 24], sizes = [2, 8, 8], strides = [1, 1, 1]} : vector<2x8x32xf32> to vector<2x8x8xf32>
    %100 = vector.extract_strided_slice %46 {offsets = [0, 0, 24], sizes = [2, 8, 8], strides = [1, 1, 1]} : vector<2x8x32xf32> to vector<2x8x8xf32>
    "tpu.trace_start"() <{level = 10 : i32, message = "bqd,bkd->bqk"}> : () -> ()
    %cst_25 = arith.constant dense<0.000000e+00> : vector<2x8x8xf32>
    %101 = tpu.matmul %98, %99, %cst_25 {dimension_numbers = #tpu.dot_dimension_numbers<[2], [2], [1], [1], [0, 0, 0, 1, 1, 1], [0], [0]>} : vector<2x8x8xf32>, vector<2x8x8xf32>, vector<2x8x8xf32> -> vector<2x8x8xf32>
    "tpu.trace_stop"() : () -> ()
    %cst_26 = arith.constant 0.353553385 : f32
    %102 = vector.broadcast %cst_26 : f32 to vector<2x8x8xf32>
    %103 = arith.mulf %101, %102 : vector<2x8x8xf32>
    %cst_27 = arith.constant dense<0xFF800000> : vector<2x8xf32>
    %104 = vector.multi_reduction <maximumf>, %103, %cst_27 [2] : vector<2x8x8xf32> to vector<2x8xf32>
    %105 = vector.shape_cast %104 : vector<2x8xf32> to vector<2x8x1xf32>
    %106 = vector.broadcast %105 : vector<2x8x1xf32> to vector<2x8x8xf32>
    %107 = arith.subf %103, %106 : vector<2x8x8xf32>
    %108 = math.exp %107 : vector<2x8x8xf32>
    %cst_28 = arith.constant dense<0.000000e+00> : vector<2x8xf32>
    %109 = vector.multi_reduction <add>, %108, %cst_28 [2] : vector<2x8x8xf32> to vector<2x8xf32>
    %110 = vector.shape_cast %109 : vector<2x8xf32> to vector<2x8x1xf32>
    %111 = tpu.reciprocal %110 {approx = true} : vector<2x8x1xf32> -> vector<2x8x1xf32>
    %112 = vector.broadcast %111 : vector<2x8x1xf32> to vector<2x8x8xf32>
    %113 = arith.mulf %108, %112 : vector<2x8x8xf32>
    "tpu.trace_start"() <{level = 10 : i32, message = "bqk,bkd->bqd"}> : () -> ()
    %cst_29 = arith.constant dense<0.000000e+00> : vector<2x8x8xf32>
    %114 = tpu.matmul %113, %100, %cst_29 {dimension_numbers = #tpu.dot_dimension_numbers<[2], [1], [1], [2], [0, 0, 0, 1, 1, 2], [0], [0]>} : vector<2x8x8xf32>, vector<2x8x8xf32>, vector<2x8x8xf32> -> vector<2x8x8xf32>
    "tpu.trace_stop"() : () -> ()
    %115 = tpu.concatenate %63, %80, %97, %114 in 2 : vector<2x8x8xf32>, vector<2x8x8xf32>, vector<2x8x8xf32>, vector<2x8x8xf32> -> vector<2x8x32xf32>
    %116 = vector.shape_cast %115 : vector<2x8x32xf32> to vector<16x32xf32>
    %c0_30 = arith.constant 0 : index
    %c0_31 = arith.constant 0 : index
    %117 = vector.load %arg3[%c0_30, %c0_31] : memref<32x32xf32, #tpu.memory_space<vmem>>, vector<32x32xf32>
    %cst_32 = arith.constant dense<0.000000e+00> : vector<16x32xf32>
    %118 = tpu.matmul %116, %117, %cst_32 {dimension_numbers = #tpu.dot_dimension_numbers<[1], [0], [0], [1], [0, 0, 1, 1], [], []>} : vector<16x32xf32>, vector<32x32xf32>, vector<16x32xf32> -> vector<16x32xf32>
    %119 = vector.broadcast %7 : vector<1x32xf32> to vector<16x32xf32>
    %120 = arith.addf %118, %119 : vector<16x32xf32>
    %121 = arith.addf %0, %120 : vector<16x32xf32>
    %cst_33 = arith.constant dense<0.000000e+00> : vector<16xf32>
    %122 = vector.multi_reduction <add>, %121, %cst_33 [1] : vector<16x32xf32> to vector<16xf32>
    %123 = vector.shape_cast %122 : vector<16xf32> to vector<16x1xf32>
    %cst_34 = arith.constant 3.200000e+01 : f32
    %124 = vector.broadcast %cst_34 : f32 to vector<16x1xf32>
    %125 = arith.divf %123, %124 : vector<16x1xf32>
    %126 = vector.broadcast %125 : vector<16x1xf32> to vector<16x32xf32>
    %127 = arith.subf %121, %126 : vector<16x32xf32>
    %128 = arith.mulf %127, %127 : vector<16x32xf32>
    %cst_35 = arith.constant dense<0.000000e+00> : vector<16xf32>
    %129 = vector.multi_reduction <add>, %128, %cst_35 [1] : vector<16x32xf32> to vector<16xf32>
    %130 = vector.shape_cast %129 : vector<16xf32> to vector<16x1xf32>
    %cst_36 = arith.constant 3.200000e+01 : f32
    %131 = vector.broadcast %cst_36 : f32 to vector<16x1xf32>
    %132 = arith.divf %130, %131 : vector<16x1xf32>
    %133 = vector.broadcast %125 : vector<16x1xf32> to vector<16x32xf32>
    %134 = arith.subf %121, %133 : vector<16x32xf32>
    %cst_37 = arith.constant 9.99999974E-6 : f32
    %135 = vector.broadcast %cst_37 : f32 to vector<16x1xf32>
    %136 = arith.addf %132, %135 : vector<16x1xf32>
    %137 = math.rsqrt %136 : vector<16x1xf32>
    %138 = vector.broadcast %137 : vector<16x1xf32> to vector<16x32xf32>
    %139 = arith.mulf %134, %138 : vector<16x32xf32>
    %140 = vector.broadcast %8 : vector<1x32xf32> to vector<16x32xf32>
    %141 = arith.mulf %139, %140 : vector<16x32xf32>
    %142 = vector.broadcast %9 : vector<1x32xf32> to vector<16x32xf32>
    %143 = arith.addf %141, %142 : vector<16x32xf32>
    %c0_38 = arith.constant 0 : index
    %c0_39 = arith.constant 0 : index
    %144 = vector.load %arg4[%c0_38, %c0_39] : memref<32x128xf32, #tpu.memory_space<vmem>>, vector<32x128xf32>
    %cst_40 = arith.constant dense<0.000000e+00> : vector<16x128xf32>
    %145 = tpu.matmul %143, %144, %cst_40 {dimension_numbers = #tpu.dot_dimension_numbers<[1], [0], [0], [1], [0, 0, 1, 1], [], []>} : vector<16x32xf32>, vector<32x128xf32>, vector<16x128xf32> -> vector<16x128xf32>
    %c0_41 = arith.constant 0 : index
    %c0_42 = arith.constant 0 : index
    %146 = vector.load %arg7[%c0_41, %c0_42] : memref<1x128xf32, #tpu.memory_space<vmem>>, vector<1x128xf32>
    %147 = vector.broadcast %146 : vector<1x128xf32> to vector<16x128xf32>
    %148 = arith.addf %145, %147 : vector<16x128xf32>
    %cst_43 = arith.constant 5.000000e-01 : f32
    %149 = vector.broadcast %cst_43 : f32 to vector<16x128xf32>
    %150 = arith.mulf %149, %148 : vector<16x128xf32>
    %cst_44 = arith.constant 1.41421354 : f32
    %151 = vector.broadcast %cst_44 : f32 to vector<16x128xf32>
    %152 = arith.divf %148, %151 : vector<16x128xf32>
    %153 = math.erf %152 : vector<16x128xf32>
    %cst_45 = arith.constant 1.000000e+00 : f32
    %154 = vector.broadcast %cst_45 : f32 to vector<16x128xf32>
    %155 = arith.addf %154, %153 : vector<16x128xf32>
    %156 = arith.mulf %150, %155 : vector<16x128xf32>
    %c0_46 = arith.constant 0 : index
    %c0_47 = arith.constant 0 : index
    %157 = vector.load %arg5[%c0_46, %c0_47] : memref<128x32xf32, #tpu.memory_space<vmem>>, vector<128x32xf32>
    %cst_48 = arith.constant dense<0.000000e+00> : vector<16x32xf32>
    %158 = tpu.matmul %156, %157, %cst_48 {dimension_numbers = #tpu.dot_dimension_numbers<[1], [0], [0], [1], [0, 0, 1, 1], [], []>} : vector<16x128xf32>, vector<128x32xf32>, vector<16x32xf32> -> vector<16x32xf32>
    %159 = vector.broadcast %10 : vector<1x32xf32> to vector<16x32xf32>
    %160 = arith.addf %158, %159 : vector<16x32xf32>
    %161 = arith.addf %121, %160 : vector<16x32xf32>
    %c0_49 = arith.constant 0 : index
    %c0_50 = arith.constant 0 : index
    %162 = vector.load %arg8[%c0_49, %c0_50] : memref<16x32xf32, #tpu.memory_space<vmem>>, vector<16x32xf32>
    tpu.vector_store %arg8[%c0_49, %c0_50], %161 {strides = array<i32>} : memref<16x32xf32, #tpu.memory_space<vmem>>, vector<16x32xf32>,
    return
  }
  func.func @transform_0(%arg0: i32) -> (i32, i32) {
    %c0_i32 = arith.constant 0 : i32
    %c0_i32_0 = arith.constant 0 : i32
    %c0_i32_1 = arith.constant 0 : i32
    return %c0_i32, %c0_i32_0 : i32, i32
  }
  func.func @transform_1(%arg0: i32) -> (i32, i32) {
    %c0_i32 = arith.constant 0 : i32
    %c0_i32_0 = arith.constant 0 : i32
    %c0_i32_1 = arith.constant 0 : i32
    return %c0_i32, %c0_i32_0 : i32, i32
  }
  func.func @transform_2(%arg0: i32) -> (i32, i32) {
    %c0_i32 = arith.constant 0 : i32
    %c0_i32_0 = arith.constant 0 : i32
    %c0_i32_1 = arith.constant 0 : i32
    return %c0_i32, %c0_i32_0 : i32, i32
  }
  func.func @transform_3(%arg0: i32) -> (i32, i32) {
    %c0_i32 = arith.constant 0 : i32
    %c0_i32_0 = arith.constant 0 : i32
    %c0_i32_1 = arith.constant 0 : i32
    return %c0_i32, %c0_i32_0 : i32, i32
  }
  func.func @transform_4(%arg0: i32) -> (i32, i32) {
    %c0_i32 = arith.constant 0 : i32
    %c0_i32_0 = arith.constant 0 : i32
    %c0_i32_1 = arith.constant 0 : i32
    return %c0_i32, %c0_i32_0 : i32, i32
  }
  func.func @transform_5(%arg0: i32) -> (i32, i32) {
    %c0_i32 = arith.constant 0 : i32
    %c0_i32_0 = arith.constant 0 : i32
    %c0_i32_1 = arith.constant 0 : i32
    return %c0_i32, %c0_i32_0 : i32, i32
  }
  func.func @transform_6(%arg0: i32) -> (i32, i32) {
    %c0_i32 = arith.constant 0 : i32
    %c0_i32_0 = arith.constant 0 : i32
    %c0_i32_1 = arith.constant 0 : i32
    return %c0_i32, %c0_i32_0 : i32, i32
  }
  func.func @transform_7(%arg0: i32) -> (i32, i32) {
    %c0_i32 = arith.constant 0 : i32
    %c0_i32_0 = arith.constant 0 : i32
    %c0_i32_1 = arith.constant 0 : i32
    return %c0_i32, %c0_i32_0 : i32, i32
  }
}

</mosaic_0001>

<llo_original>
// kernel: tpu_custom_call.1
$region0: #{tpu_custom_call.1}
  #allocation0 [shape = 'u32[]', space=smem, size = 0x4, offset = 0x4, fixed_abs, tag = 'smem constant byte address 0x4 - core index']
  #allocation1 [shape = 'u32[144,128]{1,0:T(1,128)}', space=vmem, size = 0x12000, scoped, tag = 'internal scratch']
  %s0 = inlined_call_operand.vmem [shape: f32[16,32], index: 0, kind: input, shape index: {}]
  %s1 = inlined_call_operand.vmem [shape: f32[32,96], index: 1, kind: input, shape index: {}]
  %s2 = inlined_call_operand.vmem [shape: f32[32,32], index: 2, kind: input, shape index: {}]
  %s3 = inlined_call_operand.vmem [shape: f32[32,128], index: 3, kind: input, shape index: {}]
  %s4 = inlined_call_operand.vmem [shape: f32[128,32], index: 4, kind: input, shape index: {}]
  %s5 = inlined_call_operand.vmem [shape: f32[9,32], index: 5, kind: input, shape index: {}]
  %s6 = inlined_call_operand.vmem [shape: f32[1,128], index: 6, kind: input, shape index: {}]
  %s7 = inlined_call_operand.hbm [shape: f32[16,32], index: 7, kind: output, shape index: {}]
  %s8 = sld [smem:[#allocation0]]
  $region38: #{tpu_custom_call.1} parent=0
    _
  %s10 = ssub.s32 1, %s8
  %s11 = scalar_select 0, %s10, %s8
  $region1: #{tpu_custom_call.1} parent=0
    #allocation2 [shape = 'u8[8192]{0}', space=vmem, size = 0x2000, scoped, tag = 'output window, operand 0, single buffered']
    #allocation3 [shape = 's32[1]{0}', space=sflag, size = 0x4, scoped, tag = 'scoped memory for tpu_custom_call.1']
    %12 = vsyncpa [#allocation3], 0
    // Predicated region
    $region2: #{tpu_custom_call.1} parent=1 // pred_check
      _
    $region3: #{tpu_custom_call.1} parent=1 // pred_check_branch
      %14 = sbr.rel (0) target = $region5
    $region4: #{tpu_custom_call.1} parent=1 // pred_region
      _
    $region5: #{tpu_custom_call.1} parent=1 // pred_fallthru
      _
    // Predicated region
    $region6: #{tpu_custom_call.1} parent=1 // pred_check
      _
    $region7: #{tpu_custom_call.1} parent=1 // pred_check_branch
      %16 = sbr.rel (0) target = $region9
    $region8: #{tpu_custom_call.1} parent=1 // pred_region
      _
    $region9: #{tpu_custom_call.1} parent=1 // pred_fallthru
      _
    // Predicated region
    $region10: #{tpu_custom_call.1} parent=1 // pred_check
      _
    $region11: #{tpu_custom_call.1} parent=1 // pred_check_branch
      %18 = sbr.rel (0) target = $region13
    $region12: #{tpu_custom_call.1} parent=1 // pred_region
      _
    $region13: #{tpu_custom_call.1} parent=1 // pred_fallthru
      _
    // Predicated region
    $region14: #{tpu_custom_call.1} parent=1 // pred_check
      _
    $region15: #{tpu_custom_call.1} parent=1 // pred_check_branch
      %20 = sbr.rel (0) target = $region17
    $region16: #{tpu_custom_call.1} parent=1 // pred_region
      _
    $region17: #{tpu_custom_call.1} parent=1 // pred_fallthru
      _
    // Predicated region
    $region18: #{tpu_custom_call.1} parent=1 // pred_check
      _
    $region19: #{tpu_custom_call.1} parent=1 // pred_check_branch
      %22 = sbr.rel (0) target = $region21
    $region20: #{tpu_custom_call.1} parent=1 // pred_region
      _
    $region21: #{tpu_custom_call.1} parent=1 // pred_fallthru
      _
    // Predicated region
    $region22: #{tpu_custom_call.1} parent=1 // pred_check
      _
    $region23: #{tpu_custom_call.1} parent=1 // pred_check_branch
      %24 = sbr.rel (0) target = $region25
    $region24: #{tpu_custom_call.1} parent=1 // pred_region
      _
    $region25: #{tpu_custom_call.1} parent=1 // pred_fallthru
      _
    // Predicated region
    $region26: #{tpu_custom_call.1} parent=1 // pred_check
      _
    $region27: #{tpu_custom_call.1} parent=1 // pred_check_branch
      %26 = sbr.rel (0) target = $region29
    $region28: #{tpu_custom_call.1} parent=1 // pred_region
      _
    $region29: #{tpu_custom_call.1} parent=1 // pred_fallthru
      _
    %v27 = vld [vmem:[%s0] sm:$0xff]
    %v28 = vld [vmem:[%s0 + $0x8] sm:$0xff]
    %v29 = vld [vmem:[%s5] sm:$0xff]
    %v30 = vld [vmem:[%s5 + $0x8] sm:$0x1]
    %vm31 = vcmask 261120
    %v32 = vsel %vm31, %v27, 0.0
    %33 = vadd.xlane.f32.xlu0 %v32
    %v34 = vpop.xlane.xlu0 %33
    %v35 = vsel %vm31, %v28, 0.0
    %36 = vadd.xlane.f32.xlu0 %v35
    %v37 = vpop.xlane.xlu0 %36
    %v38 = vrcp.pop 32.0
    %v39 = vmul.f32 %v34, %v38
    %v40 = vmul.f32 %v37, %v38
    %v41 = vsub.f32 %v27, %v39
    %v42 = vsub.f32 %v28, %v40
    %v43 = vmul.f32 %v41, %v41
    %v44 = vmul.f32 %v42, %v42
    %v45 = vsel %vm31, %v43, 0.0
    %46 = vadd.xlane.f32.xlu0 %v45
    %v47 = vpop.xlane.xlu0 %46
    %v48 = vsel %vm31, %v44, 0.0
    %49 = vadd.xlane.f32.xlu0 %v48
    %v50 = vpop.xlane.xlu0 %49
    %v51 = vmul.f32 %v47, %v38
    %v52 = vmul.f32 %v50, %v38
    %v53 = vadd.f32 %v51, 1e-05
    %v54 = vadd.f32 %v52, 1e-05
    %v55 = vrsqrt.pop %v53
    %v56 = vrsqrt.pop %v54
    %v57 = vmul.f32 %v41, %v55
    %v58 = vmul.f32 %v42, %v56
    %v59 = vlaneseq
    %v60 = vshrl.u32 %v59, 7
    %v61 = vsub.s32 0, %v60
    %v62 = vrot.slane %v29, %v61
    %v63 = vmul.f32 %v57, %v62
    %v64 = vmul.f32 %v58, %v62
    %v65 = vlaneseq
    %v66 = vshrl.u32 %v65, 7
    %v67 = vsub.s32 1, %v66
    %v68 = vrot.slane %v29, %v67
    %v69 = vadd.f32 %v63, %v68
    %v70 = vadd.f32 %v64, %v68
    %v71 = vld [vmem:[%s1] sm:$0xff]
    %v72 = vld [vmem:[%s1 + $0x8] sm:$0xff]
    %v73 = vld [vmem:[%s1 + $0x10] sm:$0xff]
    %v74 = vld [vmem:[%s1 + $0x18] sm:$0xff]
    %v76 = vsel %vm31, %v69, 0
    %v79 = vsel %vm31, %v70, 0
    %81 = vmatprep.subr.mxu0 0.0
    %82 = vmatpush1.msra.mxu0 %v71
    %83 = vmatprep.subr.mxu0 0.0
    %84 = vmatpush1.msra.mxu0 %v72
    %85 = vmatprep.subr.mxu0 0.0
    %86 = vmatpush1.msra.mxu0 %v73
    %87 = vmatprep.subr.mxu0 0.0
    %88 = vmatpush1.msra.mxu0 %v74
    %89 = vmatprep.subr.mxu0 0.0
    %90 = vmatpush1.msra.mxu0 0.0
    %91 = vmatprep.subr.mxu0 0.0
    %92 = vmatpush1.msra.mxu0 0.0
    %93 = vmatprep.subr.mxu0 0.0
    %94 = vmatpush1.msra.mxu0 0.0
    %95 = vmatprep.subr.mxu0 0.0
    %96 = vmatpush1.msra.mxu0 0.0
    %97 = vmatprep.subr.mxu0 0.0
    %98 = vmatpush1.msra.mxu0 0.0
    %99 = vmatprep.subr.mxu0 0.0
    %100 = vmatpush1.msra.mxu0 0.0
    %101 = vmatprep.subr.mxu0 0.0
    %102 = vmatpush1.msra.mxu0 0.0
    %103 = vmatprep.subr.mxu0 0.0
    %104 = vmatpush1.msra.mxu0 0.0
    %105 = vmatprep.subr.mxu0 0.0
    %106 = vmatpush1.msra.mxu0 0.0
    %107 = vmatprep.subr.mxu0 0.0
    %108 = vmatpush1.msra.mxu0 0.0
    %109 = vmatprep.subr.mxu0 0.0
    %110 = vmatpush1.msra.mxu0 0.0
    %111 = vmatprep.subr.mxu0 0.0
    %112 = vmatpush1.msra.mxu0 0.0
    %113 = vmatprep.subr.mxu0 0.0
    %114 = vmatpush1.msra.mxu0 0.0
    %115 = vmatprep.subr.mxu0 0.0
    %116 = vmatpush1.msra.mxu0 0.0
    %117 = vmatprep.subr.mxu0 0.0
    %118 = vmatpush1.msra.mxu0 0.0
    %119 = vmatprep.subr.mxu0 0.0
    %120 = vmatpush1.msra.mxu0 0.0
    %121 = vmatprep.subr.mxu0 0.0
    %122 = vmatpush1.msra.mxu0 0.0
    %123 = vmatprep.subr.mxu0 0.0
    %124 = vmatpush1.msra.mxu0 0.0
    %125 = vmatprep.subr.mxu0 0.0
    %126 = vmatpush1.msra.mxu0 0.0
    %127 = vmatprep.subr.mxu0 0.0
    %128 = vmatpush1.msra.mxu0 0.0
    %129 = vmatprep.subr.mxu0 0.0
    %130 = vmatpush1.msra.mxu0 0.0
    %131 = vmatprep.subr.mxu0 0.0
    %132 = vmatpush1.msra.mxu0 0.0
    %133 = vmatprep.subr.mxu0 0.0
    %134 = vmatpush1.msra.mxu0 0.0
    %135 = vmatprep.subr.mxu0 0.0
    %136 = vmatpush1.msra.mxu0 0.0
    %137 = vmatprep.subr.mxu0 0.0
    %138 = vmatpush1.msra.mxu0 0.0
    %139 = vmatprep.subr.mxu0 0.0
    %140 = vmatpush1.msra.mxu0 0.0
    %141 = vmatprep.subr.mxu0 0.0
    %142 = vmatpush1.msra.mxu0 0.0
    %143 = vmatprep.subr.mxu0 0.0
    %144 = vmatpush1.msra.mxu0 0.0
    %145 = vmatprep.mubr.f32.mxu0 0.0
    %146 = vmatmul.mubr.f32.gmra.mrb[0].mxu0 %v76
    %v147 = vpop.f32.mrb[0].mxu0
    %v148 = vadd.f32 0.0, %v147
    %v149 = vpop.f32.mrb[0].mxu0
    %150 = vmatprep.mubr.f32.mxu0 0.0
    %151 = vmatmul.mubr.f32.gmra.mrb[0].mxu0 %v79
    %v152 = vpop.f32.mrb[0].mxu0
    %v153 = vadd.f32 0.0, %v152
    %v154 = vpop.f32.mrb[0].mxu0
    %155 = vdwg.mxu0
    %v156 = vlaneseq
    %v157 = vshrl.u32 %v156, 7
    %v158 = vsub.s32 2, %v157
    %v159 = vrot.slane %v29, %v158
    %v160 = vadd.f32 %v148, %v159
    %v161 = vadd.f32 %v153, %v159
    %v162 = vlaneseq
    %v163 = vshrl.u32 %v162, 7
    %v164 = vsub.s32 3, %v163
    %v165 = vrot.slane %v29, %v164
    %167 = vrot.lane.b32.xlu0 %v165, 32
    %v168 = vpop.permute.xlu0 %167
    %v170 = vadd.f32 %v148, %v168
    %v171 = vadd.f32 %v153, %v168
    %v172 = vlaneseq
    %v173 = vshrl.u32 %v172, 7
    %v174 = vsub.s32 4, %v173
    %v175 = vrot.slane %v29, %v174
    %177 = vrot.lane.b32.xlu0 %v175, 64
    %v178 = vpop.permute.xlu0 %177
    %v180 = vadd.f32 %v148, %v178
    %v181 = vadd.f32 %v153, %v178
    %183 = vrot.lane.b32.xlu0 %v170, 96
    %v184 = vpop.permute.xlu0 %183
    %vm185 = vcmask 64512
    %v187 = vsel %vm185, %v160, 0
    %v189 = vsel %vm185, %v184, 0
    %191 = vmatprep.subr.mxu0 0.0
    %192 = vmatpush1.xpose.msra.mxu0 %v189
    %193 = vmatprep.subr.mxu0 0.0
    %194 = vmatpush1.xpose.msra.mxu0 0.0
    %195 = vmatprep.subr.mxu0 0.0
    %196 = vmatpush1.xpose.msra.mxu0 0.0
    %197 = vmatprep.subr.mxu0 0.0
    %198 = vmatpush1.xpose.msra.mxu0 0.0
    %199 = vmatprep.subr.mxu0 0.0
    %200 = vmatpush1.xpose.msra.mxu0 0.0
    %201 = vmatprep.subr.mxu0 0.0
    %202 = vmatpush1.xpose.msra.mxu0 0.0
    %203 = vmatprep.subr.mxu0 0.0
    %204 = vmatpush1.xpose.msra.mxu0 0.0
    %205 = vmatprep.subr.mxu0 0.0
    %206 = vmatpush1.xpose.msra.mxu0 0.0
    %207 = vmatprep.subr.mxu0 0.0
    %208 = vmatpush1.xpose.msra.mxu0 0.0
    %209 = vmatprep.subr.mxu0 0.0
    %210 = vmatpush1.xpose.msra.mxu0 0.0
    %211 = vmatprep.subr.mxu0 0.0
    %212 = vmatpush1.xpose.msra.mxu0 0.0
    %213 = vmatprep.subr.mxu0 0.0
    %214 = vmatpush1.xpose.msra.mxu0 0.0
    %215 = vmatprep.subr.mxu0 0.0
    %216 = vmatpush1.xpose.msra.mxu0 0.0
    %217 = vmatprep.subr.mxu0 0.0
    %218 = vmatpush1.xpose.msra.mxu0 0.0
    %219 = vmatprep.subr.mxu0 0.0
    %220 = vmatpush1.xpose.msra.mxu0 0.0
    %221 = vmatprep.subr.mxu0 0.0
    %222 = vmatpush1.xpose.msra.mxu0 0.0
    %223 = vmatprep.subr.mxu0 0.0
    %224 = vmatpush1.xpose.msra.mxu0 0.0
    %225 = vmatprep.subr.mxu0 0.0
    %226 = vmatpush1.xpose.msra.mxu0 0.0
    %227 = vmatprep.subr.mxu0 0.0
    %228 = vmatpush1.xpose.msra.mxu0 0.0
    %229 = vmatprep.subr.mxu0 0.0
    %230 = vmatpush1.xpose.msra.mxu0 0.0
    %231 = vmatprep.subr.mxu0 0.0
    %232 = vmatpush1.xpose.msra.mxu0 0.0
    %233 = vmatprep.subr.mxu0 0.0
    %234 = vmatpush1.xpose.msra.mxu0 0.0
    %235 = vmatprep.subr.mxu0 0.0
    %236 = vmatpush1.xpose.msra.mxu0 0.0
    %237 = vmatprep.subr.mxu0 0.0
    %238 = vmatpush1.xpose.msra.mxu0 0.0
    %239 = vmatprep.subr.mxu0 0.0
    %240 = vmatpush1.xpose.msra.mxu0 0.0
    %241 = vmatprep.subr.mxu0 0.0
    %242 = vmatpush1.xpose.msra.mxu0 0.0
    %243 = vmatprep.subr.mxu0 0.0
    %244 = vmatpush1.xpose.msra.mxu0 0.0
    %245 = vmatprep.subr.mxu0 0.0
    %246 = vmatpush1.xpose.msra.mxu0 0.0
    %247 = vmatprep.subr.mxu0 0.0
    %248 = vmatpush1.xpose.msra.mxu0 0.0
    %249 = vmatprep.subr.mxu0 0.0
    %250 = vmatpush1.xpose.msra.mxu0 0.0
    %251 = vmatprep.subr.mxu0 0.0
    %252 = vmatpush1.xpose.msra.mxu0 0.0
    %253 = vmatprep.subr.mxu0 0.0
    %254 = vmatpush1.xpose.msra.mxu0 0.0
    %255 = vmatprep.mubr.f32.mxu0 0.0
    %256 = vmatmul.mubr.f32.gmra.mrb[0].mxu0 %v187
    %v257 = vpop.f32.mrb[0].mxu0
    %v258 = vadd.f32 0.0, %v257
    %v259 = vpop.f32.mrb[0].mxu0
    %260 = vdwg.mxu0
    %262 = vrot.lane.b32.xlu0 %v171, 96
    %v263 = vpop.permute.xlu0 %262
    %v265 = vsel %vm185, %v161, 0
    %v267 = vsel %vm185, %v263, 0
    %269 = vmatprep.subr.mxu0 0.0
    %270 = vmatpush1.xpose.msra.mxu0 %v267
    %271 = vmatprep.subr.mxu0 0.0
    %272 = vmatpush1.xpose.msra.mxu0 0.0
    %273 = vmatprep.subr.mxu0 0.0
    %274 = vmatpush1.xpose.msra.mxu0 0.0
    %275 = vmatprep.subr.mxu0 0.0
    %276 = vmatpush1.xpose.msra.mxu0 0.0
    %277 = vmatprep.subr.mxu0 0.0
    %278 = vmatpush1.xpose.msra.mxu0 0.0
    %279 = vmatprep.subr.mxu0 0.0
    %280 = vmatpush1.xpose.msra.mxu0 0.0
    %281 = vmatprep.subr.mxu0 0.0
    %282 = vmatpush1.xpose.msra.mxu0 0.0
    %283 = vmatprep.subr.mxu0 0.0
    %284 = vmatpush1.xpose.msra.mxu0 0.0
    %285 = vmatprep.subr.mxu0 0.0
    %286 = vmatpush1.xpose.msra.mxu0 0.0
    %287 = vmatprep.subr.mxu0 0.0
    %288 = vmatpush1.xpose.msra.mxu0 0.0
    %289 = vmatprep.subr.mxu0 0.0
    %290 = vmatpush1.xpose.msra.mxu0 0.0
    %291 = vmatprep.subr.mxu0 0.0
    %292 = vmatpush1.xpose.msra.mxu0 0.0
    %293 = vmatprep.subr.mxu0 0.0
    %294 = vmatpush1.xpose.msra.mxu0 0.0
    %295 = vmatprep.subr.mxu0 0.0
    %296 = vmatpush1.xpose.msra.mxu0 0.0
    %297 = vmatprep.subr.mxu0 0.0
    %298 = vmatpush1.xpose.msra.mxu0 0.0
    %299 = vmatprep.subr.mxu0 0.0
    %300 = vmatpush1.xpose.msra.mxu0 0.0
    %301 = vmatprep.subr.mxu0 0.0
    %302 = vmatpush1.xpose.msra.mxu0 0.0
    %303 = vmatprep.subr.mxu0 0.0
    %304 = vmatpush1.xpose.msra.mxu0 0.0
    %305 = vmatprep.subr.mxu0 0.0
    %306 = vmatpush1.xpose.msra.mxu0 0.0
    %307 = vmatprep.subr.mxu0 0.0
    %308 = vmatpush1.xpose.msra.mxu0 0.0
    %309 = vmatprep.subr.mxu0 0.0
    %310 = vmatpush1.xpose.msra.mxu0 0.0
    %311 = vmatprep.subr.mxu0 0.0
    %312 = vmatpush1.xpose.msra.mxu0 0.0
    %313 = vmatprep.subr.mxu0 0.0
    %314 = vmatpush1.xpose.msra.mxu0 0.0
    %315 = vmatprep.subr.mxu0 0.0
    %316 = vmatpush1.xpose.msra.mxu0 0.0
    %317 = vmatprep.subr.mxu0 0.0
    %318 = vmatpush1.xpose.msra.mxu0 0.0
    %319 = vmatprep.subr.mxu0 0.0
    %320 = vmatpush1.xpose.msra.mxu0 0.0
    %321 = vmatprep.subr.mxu0 0.0
    %322 = vmatpush1.xpose.msra.mxu0 0.0
    %323 = vmatprep.subr.mxu0 0.0
    %324 = vmatpush1.xpose.msra.mxu0 0.0
    %325 = vmatprep.subr.mxu0 0.0
    %326 = vmatpush1.xpose.msra.mxu0 0.0
    %327 = vmatprep.subr.mxu0 0.0
    %328 = vmatpush1.xpose.msra.mxu0 0.0
    %329 = vmatprep.subr.mxu0 0.0
    %330 = vmatpush1.xpose.msra.mxu0 0.0
    %331 = vmatprep.subr.mxu0 0.0
    %332 = vmatpush1.xpose.msra.mxu0 0.0
    %333 = vmatprep.mubr.f32.mxu0 0.0
    %334 = vmatmul.mubr.f32.gmra.mrb[0].mxu0 %v265
    %v335 = vpop.f32.mrb[0].mxu0
    %v336 = vadd.f32 0.0, %v335
    %v337 = vpop.f32.mrb[0].mxu0
    %338 = vdwg.mxu0
    %v339 = vmul.f32 %v258, 0.35355338
    %v340 = vmul.f32 %v336, 0.35355338
    %v341 = vsel %vm185, %v339, -inf
    %342 = vmax.xlane.f32.xlu0 %v341
    %v343 = vpop.xlane.xlu0 %342
    %v344 = vsel %vm185, %v340, -inf
    %345 = vmax.xlane.f32.xlu0 %v344
    %v346 = vpop.xlane.xlu0 %345
    %v347 = vsub.f32 %v339, %v343
    %v348 = vsub.f32 %v340, %v346
    %v349 = vmul.f32 %v347, 1.442695
    %v350 = vpow.pop %v349
    %v351 = vmul.f32 %v348, 1.442695
    %v352 = vpow.pop %v351
    %v353 = vsel %vm185, %v350, 0.0
    %354 = vadd.xlane.f32.xlu0 %v353
    %v355 = vpop.xlane.xlu0 %354
    %v356 = vsel %vm185, %v352, 0.0
    %357 = vadd.xlane.f32.xlu0 %v356
    %v358 = vpop.xlane.xlu0 %357
    %v359 = vrcp.pop %v355
    %v360 = vrcp.pop %v358
    %v361 = vmul.f32 %v350, %v359
    %v362 = vmul.f32 %v352, %v360
    %364 = vrot.lane.b32.xlu0 %v180, 64
    %v365 = vpop.permute.xlu0 %364
    %v368 = vsel %vm185, %v361, 0
    %370 = vmatprep.subr.mxu0 0.0
    %371 = vmatpush1.msra.mxu0 %v365
    %372 = vmatprep.subr.mxu0 0.0
    %373 = vmatpush1.msra.mxu0 0.0
    %374 = vmatprep.subr.mxu0 0.0
    %375 = vmatpush1.msra.mxu0 0.0
    %376 = vmatprep.subr.mxu0 0.0
    %377 = vmatpush1.msra.mxu0 0.0
    %378 = vmatprep.subr.mxu0 0.0
    %379 = vmatpush1.msra.mxu0 0.0
    %380 = vmatprep.subr.mxu0 0.0
    %381 = vmatpush1.msra.mxu0 0.0
    %382 = vmatprep.subr.mxu0 0.0
    %383 = vmatpush1.msra.mxu0 0.0
    %384 = vmatprep.subr.mxu0 0.0
    %385 = vmatpush1.msra.mxu0 0.0
    %386 = vmatprep.subr.mxu0 0.0
    %387 = vmatpush1.msra.mxu0 0.0
    %388 = vmatprep.subr.mxu0 0.0
    %389 = vmatpush1.msra.mxu0 0.0
    %390 = vmatprep.subr.mxu0 0.0
    %391 = vmatpush1.msra.mxu0 0.0
    %392 = vmatprep.subr.mxu0 0.0
    %393 = vmatpush1.msra.mxu0 0.0
    %394 = vmatprep.subr.mxu0 0.0
    %395 = vmatpush1.msra.mxu0 0.0
    %396 = vmatprep.subr.mxu0 0.0
    %397 = vmatpush1.msra.mxu0 0.0
    %398 = vmatprep.subr.mxu0 0.0
    %399 = vmatpush1.msra.mxu0 0.0
    %400 = vmatprep.subr.mxu0 0.0
    %401 = vmatpush1.msra.mxu0 0.0
    %402 = vmatprep.subr.mxu0 0.0
    %403 = vmatpush1.msra.mxu0 0.0
    %404 = vmatprep.subr.mxu0 0.0
    %405 = vmatpush1.msra.mxu0 0.0
    %406 = vmatprep.subr.mxu0 0.0
    %407 = vmatpush1.msra.mxu0 0.0
    %408 = vmatprep.subr.mxu0 0.0
    %409 = vmatpush1.msra.mxu0 0.0
    %410 = vmatprep.subr.mxu0 0.0
    %411 = vmatpush1.msra.mxu0 0.0
    %412 = vmatprep.subr.mxu0 0.0
    %413 = vmatpush1.msra.mxu0 0.0
    %414 = vmatprep.subr.mxu0 0.0
    %415 = vmatpush1.msra.mxu0 0.0
    %416 = vmatprep.subr.mxu0 0.0
    %417 = vmatpush1.msra.mxu0 0.0
    %418 = vmatprep.subr.mxu0 0.0
    %419 = vmatpush1.msra.mxu0 0.0
    %420 = vmatprep.subr.mxu0 0.0
    %421 = vmatpush1.msra.mxu0 0.0
    %422 = vmatprep.subr.mxu0 0.0
    %423 = vmatpush1.msra.mxu0 0.0
    %424 = vmatprep.subr.mxu0 0.0
    %425 = vmatpush1.msra.mxu0 0.0
    %426 = vmatprep.subr.mxu0 0.0
    %427 = vmatpush1.msra.mxu0 0.0
    %428 = vmatprep.subr.mxu0 0.0
    %429 = vmatpush1.msra.mxu0 0.0
    %430 = vmatprep.subr.mxu0 0.0
    %431 = vmatpush1.msra.mxu0 0.0
    %432 = vmatprep.subr.mxu0 0.0
    %433 = vmatpush1.msra.mxu0 0.0
    %434 = vmatprep.mubr.f32.mxu0 0.0
    %435 = vmatmul.mubr.f32.gmra.mrb[0].mxu0 %v368
    %v436 = vpop.f32.mrb[0].mxu0
    %v437 = vadd.f32 0.0, %v436
    %v438 = vpop.f32.mrb[0].mxu0
    %439 = vdwg.mxu0
    %441 = vrot.lane.b32.xlu0 %v181, 64
    %v442 = vpop.permute.xlu0 %441
    %v445 = vsel %vm185, %v362, 0
    %447 = vmatprep.subr.mxu0 0.0
    %448 = vmatpush1.msra.mxu0 %v442
    %449 = vmatprep.subr.mxu0 0.0
    %450 = vmatpush1.msra.mxu0 0.0
    %451 = vmatprep.subr.mxu0 0.0
    %452 = vmatpush1.msra.mxu0 0.0
    %453 = vmatprep.subr.mxu0 0.0
    %454 = vmatpush1.msra.mxu0 0.0
    %455 = vmatprep.subr.mxu0 0.0
    %456 = vmatpush1.msra.mxu0 0.0
    %457 = vmatprep.subr.mxu0 0.0
    %458 = vmatpush1.msra.mxu0 0.0
    %459 = vmatprep.subr.mxu0 0.0
    %460 = vmatpush1.msra.mxu0 0.0
    %461 = vmatprep.subr.mxu0 0.0
    %462 = vmatpush1.msra.mxu0 0.0
    %463 = vmatprep.subr.mxu0 0.0
    %464 = vmatpush1.msra.mxu0 0.0
    %465 = vmatprep.subr.mxu0 0.0
    %466 = vmatpush1.msra.mxu0 0.0
    %467 = vmatprep.subr.mxu0 0.0
    %468 = vmatpush1.msra.mxu0 0.0
    %469 = vmatprep.subr.mxu0 0.0
    %470 = vmatpush1.msra.mxu0 0.0
    %471 = vmatprep.subr.mxu0 0.0
    %472 = vmatpush1.msra.mxu0 0.0
    %473 = vmatprep.subr.mxu0 0.0
    %474 = vmatpush1.msra.mxu0 0.0
    %475 = vmatprep.subr.mxu0 0.0
    %476 = vmatpush1.msra.mxu0 0.0
    %477 = vmatprep.subr.mxu0 0.0
    %478 = vmatpush1.msra.mxu0 0.0
    %479 = vmatprep.subr.mxu0 0.0
    %480 = vmatpush1.msra.mxu0 0.0
    %481 = vmatprep.subr.mxu0 0.0
    %482 = vmatpush1.msra.mxu0 0.0
    %483 = vmatprep.subr.mxu0 0.0
    %484 = vmatpush1.msra.mxu0 0.0
    %485 = vmatprep.subr.mxu0 0.0
    %486 = vmatpush1.msra.mxu0 0.0
    %487 = vmatprep.subr.mxu0 0.0
    %488 = vmatpush1.msra.mxu0 0.0
    %489 = vmatprep.subr.mxu0 0.0
    %490 = vmatpush1.msra.mxu0 0.0
    %491 = vmatprep.subr.mxu0 0.0
    %492 = vmatpush1.msra.mxu0 0.0
    %493 = vmatprep.subr.mxu0 0.0
    %494 = vmatpush1.msra.mxu0 0.0
    %495 = vmatprep.subr.mxu0 0.0
    %496 = vmatpush1.msra.mxu0 0.0
    %497 = vmatprep.subr.mxu0 0.0
    %498 = vmatpush1.msra.mxu0 0.0
    %499 = vmatprep.subr.mxu0 0.0
    %500 = vmatpush1.msra.mxu0 0.0
    %501 = vmatprep.subr.mxu0 0.0
    %502 = vmatpush1.msra.mxu0 0.0
    %503 = vmatprep.subr.mxu0 0.0
    %504 = vmatpush1.msra.mxu0 0.0
    %505 = vmatprep.subr.mxu0 0.0
    %506 = vmatpush1.msra.mxu0 0.0
    %507 = vmatprep.subr.mxu0 0.0
    %508 = vmatpush1.msra.mxu0 0.0
    %509 = vmatprep.subr.mxu0 0.0
    %510 = vmatpush1.msra.mxu0 0.0
    %511 = vmatprep.mubr.f32.mxu0 0.0
    %512 = vmatmul.mubr.f32.gmra.mrb[0].mxu0 %v445
    %v513 = vpop.f32.mrb[0].mxu0
    %v514 = vadd.f32 0.0, %v513
    %v515 = vpop.f32.mrb[0].mxu0
    %516 = vdwg.mxu0
    %517 = vrot.lane.b32.xlu0 %v160, 120
    %v518 = vpop.permute.xlu0 %517
    %519 = vrot.lane.b32.xlu0 %v170, 88
    %v520 = vpop.permute.xlu0 %519
    %v521 = vsel %vm185, %v518, 0
    %v523 = vsel %vm185, %v520, 0
    %525 = vmatprep.subr.mxu0 0.0
    %526 = vmatpush1.xpose.msra.mxu0 %v523
    %527 = vmatprep.subr.mxu0 0.0
    %528 = vmatpush1.xpose.msra.mxu0 0.0
    %529 = vmatprep.subr.mxu0 0.0
    %530 = vmatpush1.xpose.msra.mxu0 0.0
    %531 = vmatprep.subr.mxu0 0.0
    %532 = vmatpush1.xpose.msra.mxu0 0.0
    %533 = vmatprep.subr.mxu0 0.0
    %534 = vmatpush1.xpose.msra.mxu0 0.0
    %535 = vmatprep.subr.mxu0 0.0
    %536 = vmatpush1.xpose.msra.mxu0 0.0
    %537 = vmatprep.subr.mxu0 0.0
    %538 = vmatpush1.xpose.msra.mxu0 0.0
    %539 = vmatprep.subr.mxu0 0.0
    %540 = vmatpush1.xpose.msra.mxu0 0.0
    %541 = vmatprep.subr.mxu0 0.0
    %542 = vmatpush1.xpose.msra.mxu0 0.0
    %543 = vmatprep.subr.mxu0 0.0
    %544 = vmatpush1.xpose.msra.mxu0 0.0
    %545 = vmatprep.subr.mxu0 0.0
    %546 = vmatpush1.xpose.msra.mxu0 0.0
    %547 = vmatprep.subr.mxu0 0.0
    %548 = vmatpush1.xpose.msra.mxu0 0.0
    %549 = vmatprep.subr.mxu0 0.0
    %550 = vmatpush1.xpose.msra.mxu0 0.0
    %551 = vmatprep.subr.mxu0 0.0
    %552 = vmatpush1.xpose.msra.mxu0 0.0
    %553 = vmatprep.subr.mxu0 0.0
    %554 = vmatpush1.xpose.msra.mxu0 0.0
    %555 = vmatprep.subr.mxu0 0.0
    %556 = vmatpush1.xpose.msra.mxu0 0.0
    %557 = vmatprep.subr.mxu0 0.0
    %558 = vmatpush1.xpose.msra.mxu0 0.0
    %559 = vmatprep.subr.mxu0 0.0
    %560 = vmatpush1.xpose.msra.mxu0 0.0
    %561 = vmatprep.subr.mxu0 0.0
    %562 = vmatpush1.xpose.msra.mxu0 0.0
    %563 = vmatprep.subr.mxu0 0.0
    %564 = vmatpush1.xpose.msra.mxu0 0.0
    %565 = vmatprep.subr.mxu0 0.0
    %566 = vmatpush1.xpose.msra.mxu0 0.0
    %567 = vmatprep.subr.mxu0 0.0
    %568 = vmatpush1.xpose.msra.mxu0 0.0
    %569 = vmatprep.subr.mxu0 0.0
    %570 = vmatpush1.xpose.msra.mxu0 0.0
    %571 = vmatprep.subr.mxu0 0.0
    %572 = vmatpush1.xpose.msra.mxu0 0.0
    %573 = vmatprep.subr.mxu0 0.0
    %574 = vmatpush1.xpose.msra.mxu0 0.0
    %575 = vmatprep.subr.mxu0 0.0
    %576 = vmatpush1.xpose.msra.mxu0 0.0
    %577 = vmatprep.subr.mxu0 0.0
    %578 = vmatpush1.xpose.msra.mxu0 0.0
    %579 = vmatprep.subr.mxu0 0.0
    %580 = vmatpush1.xpose.msra.mxu0 0.0
    %581 = vmatprep.subr.mxu0 0.0
    %582 = vmatpush1.xpose.msra.mxu0 0.0
    %583 = vmatprep.subr.mxu0 0.0
    %584 = vmatpush1.xpose.msra.mxu0 0.0
    %585 = vmatprep.subr.mxu0 0.0
    %586 = vmatpush1.xpose.msra.mxu0 0.0
    %587 = vmatprep.subr.mxu0 0.0
    %588 = vmatpush1.xpose.msra.mxu0 0.0
    %589 = vmatprep.mubr.f32.mxu0 0.0
    %590 = vmatmul.mubr.f32.gmra.mrb[0].mxu0 %v521
    %v591 = vpop.f32.mrb[0].mxu0
    %v592 = vadd.f32 0.0, %v591
    %v593 = vpop.f32.mrb[0].mxu0
    %594 = vdwg.mxu0
    %595 = vrot.lane.b32.xlu0 %v161, 120
    %v596 = vpop.permute.xlu0 %595
    %597 = vrot.lane.b32.xlu0 %v171, 88
    %v598 = vpop.permute.xlu0 %597
    %v599 = vsel %vm185, %v596, 0
    %v601 = vsel %vm185, %v598, 0
    %603 = vmatprep.subr.mxu0 0.0
    %604 = vmatpush1.xpose.msra.mxu0 %v601
    %605 = vmatprep.subr.mxu0 0.0
    %606 = vmatpush1.xpose.msra.mxu0 0.0
    %607 = vmatprep.subr.mxu0 0.0
    %608 = vmatpush1.xpose.msra.mxu0 0.0
    %609 = vmatprep.subr.mxu0 0.0
    %610 = vmatpush1.xpose.msra.mxu0 0.0
    %611 = vmatprep.subr.mxu0 0.0
    %612 = vmatpush1.xpose.msra.mxu0 0.0
    %613 = vmatprep.subr.mxu0 0.0
    %614 = vmatpush1.xpose.msra.mxu0 0.0
    %615 = vmatprep.subr.mxu0 0.0
    %616 = vmatpush1.xpose.msra.mxu0 0.0
    %617 = vmatprep.subr.mxu0 0.0
    %618 = vmatpush1.xpose.msra.mxu0 0.0
    %619 = vmatprep.subr.mxu0 0.0
    %620 = vmatpush1.xpose.msra.mxu0 0.0
    %621 = vmatprep.subr.mxu0 0.0
    %622 = vmatpush1.xpose.msra.mxu0 0.0
    %623 = vmatprep.subr.mxu0 0.0
    %624 = vmatpush1.xpose.msra.mxu0 0.0
    %625 = vmatprep.subr.mxu0 0.0
    %626 = vmatpush1.xpose.msra.mxu0 0.0
    %627 = vmatprep.subr.mxu0 0.0
    %628 = vmatpush1.xpose.msra.mxu0 0.0
    %629 = vmatprep.subr.mxu0 0.0
    %630 = vmatpush1.xpose.msra.mxu0 0.0
    %631 = vmatprep.subr.mxu0 0.0
    %632 = vmatpush1.xpose.msra.mxu0 0.0
    %633 = vmatprep.subr.mxu0 0.0
    %634 = vmatpush1.xpose.msra.mxu0 0.0
    %635 = vmatprep.subr.mxu0 0.0
    %636 = vmatpush1.xpose.msra.mxu0 0.0
    %637 = vmatprep.subr.mxu0 0.0
    %638 = vmatpush1.xpose.msra.mxu0 0.0
    %639 = vmatprep.subr.mxu0 0.0
    %640 = vmatpush1.xpose.msra.mxu0 0.0
    %641 = vmatprep.subr.mxu0 0.0
    %642 = vmatpush1.xpose.msra.mxu0 0.0
    %643 = vmatprep.subr.mxu0 0.0
    %644 = vmatpush1.xpose.msra.mxu0 0.0
    %645 = vmatprep.subr.mxu0 0.0
    %646 = vmatpush1.xpose.msra.mxu0 0.0
    %647 = vmatprep.subr.mxu0 0.0
    %648 = vmatpush1.xpose.msra.mxu0 0.0
    %649 = vmatprep.subr.mxu0 0.0
    %650 = vmatpush1.xpose.msra.mxu0 0.0
    %651 = vmatprep.subr.mxu0 0.0
    %652 = vmatpush1.xpose.msra.mxu0 0.0
    %653 = vmatprep.subr.mxu0 0.0
    %654 = vmatpush1.xpose.msra.mxu0 0.0
    %655 = vmatprep.subr.mxu0 0.0
    %656 = vmatpush1.xpose.msra.mxu0 0.0
    %657 = vmatprep.subr.mxu0 0.0
    %658 = vmatpush1.xpose.msra.mxu0 0.0
    %659 = vmatprep.subr.mxu0 0.0
    %660 = vmatpush1.xpose.msra.mxu0 0.0
    %661 = vmatprep.subr.mxu0 0.0
    %662 = vmatpush1.xpose.msra.mxu0 0.0
    %663 = vmatprep.subr.mxu0 0.0
    %664 = vmatpush1.xpose.msra.mxu0 0.0
    %665 = vmatprep.subr.mxu0 0.0
    %666 = vmatpush1.xpose.msra.mxu0 0.0
    %667 = vmatprep.mubr.f32.mxu0 0.0
    %668 = vmatmul.mubr.f32.gmra.mrb[0].mxu0 %v599
    %v669 = vpop.f32.mrb[0].mxu0
    %v670 = vadd.f32 0.0, %v669
    %v671 = vpop.f32.mrb[0].mxu0
    %672 = vdwg.mxu0
    %v673 = vmul.f32 %v592, 0.35355338
    %v674 = vmul.f32 %v670, 0.35355338
    %v675 = vsel %vm185, %v673, -inf
    %676 = vmax.xlane.f32.xlu0 %v675
    %v677 = vpop.xlane.xlu0 %676
    %v678 = vsel %vm185, %v674, -inf
    %679 = vmax.xlane.f32.xlu0 %v678
    %v680 = vpop.xlane.xlu0 %679
    %v681 = vsub.f32 %v673, %v677
    %v682 = vsub.f32 %v674, %v680
    %v683 = vmul.f32 %v681, 1.442695
    %v684 = vpow.pop %v683
    %v685 = vmul.f32 %v682, 1.442695
    %v686 = vpow.pop %v685
    %v687 = vsel %vm185, %v684, 0.0
    %688 = vadd.xlane.f32.xlu0 %v687
    %v689 = vpop.xlane.xlu0 %688
    %v690 = vsel %vm185, %v686, 0.0
    %691 = vadd.xlane.f32.xlu0 %v690
    %v692 = vpop.xlane.xlu0 %691
    %v693 = vrcp.pop %v689
    %v694 = vrcp.pop %v692
    %v695 = vmul.f32 %v684, %v693
    %v696 = vmul.f32 %v686, %v694
    %697 = vrot.lane.b32.xlu0 %v180, 56
    %v698 = vpop.permute.xlu0 %697
    %v701 = vsel %vm185, %v695, 0
    %703 = vmatprep.subr.mxu0 0.0
    %704 = vmatpush1.msra.mxu0 %v698
    %705 = vmatprep.subr.mxu0 0.0
    %706 = vmatpush1.msra.mxu0 0.0
    %707 = vmatprep.subr.mxu0 0.0
    %708 = vmatpush1.msra.mxu0 0.0
    %709 = vmatprep.subr.mxu0 0.0
    %710 = vmatpush1.msra.mxu0 0.0
    %711 = vmatprep.subr.mxu0 0.0
    %712 = vmatpush1.msra.mxu0 0.0
    %713 = vmatprep.subr.mxu0 0.0
    %714 = vmatpush1.msra.mxu0 0.0
    %715 = vmatprep.subr.mxu0 0.0
    %716 = vmatpush1.msra.mxu0 0.0
    %717 = vmatprep.subr.mxu0 0.0
    %718 = vmatpush1.msra.mxu0 0.0
    %719 = vmatprep.subr.mxu0 0.0
    %720 = vmatpush1.msra.mxu0 0.0
    %721 = vmatprep.subr.mxu0 0.0
    %722 = vmatpush1.msra.mxu0 0.0
    %723 = vmatprep.subr.mxu0 0.0
    %724 = vmatpush1.msra.mxu0 0.0
    %725 = vmatprep.subr.mxu0 0.0
    %726 = vmatpush1.msra.mxu0 0.0
    %727 = vmatprep.subr.mxu0 0.0
    %728 = vmatpush1.msra.mxu0 0.0
    %729 = vmatprep.subr.mxu0 0.0
    %730 = vmatpush1.msra.mxu0 0.0
    %731 = vmatprep.subr.mxu0 0.0
    %732 = vmatpush1.msra.mxu0 0.0
    %733 = vmatprep.subr.mxu0 0.0
    %734 = vmatpush1.msra.mxu0 0.0
    %735 = vmatprep.subr.mxu0 0.0
    %736 = vmatpush1.msra.mxu0 0.0
    %737 = vmatprep.subr.mxu0 0.0
    %738 = vmatpush1.msra.mxu0 0.0
    %739 = vmatprep.subr.mxu0 0.0
    %740 = vmatpush1.msra.mxu0 0.0
    %741 = vmatprep.subr.mxu0 0.0
    %742 = vmatpush1.msra.mxu0 0.0
    %743 = vmatprep.subr.mxu0 0.0
    %744 = vmatpush1.msra.mxu0 0.0
    %745 = vmatprep.subr.mxu0 0.0
    %746 = vmatpush1.msra.mxu0 0.0
    %747 = vmatprep.subr.mxu0 0.0
    %748 = vmatpush1.msra.mxu0 0.0
    %749 = vmatprep.subr.mxu0 0.0
    %750 = vmatpush1.msra.mxu0 0.0
    %751 = vmatprep.subr.mxu0 0.0
    %752 = vmatpush1.msra.mxu0 0.0
    %753 = vmatprep.subr.mxu0 0.0
    %754 = vmatpush1.msra.mxu0 0.0
    %755 = vmatprep.subr.mxu0 0.0
    %756 = vmatpush1.msra.mxu0 0.0
    %757 = vmatprep.subr.mxu0 0.0
    %758 = vmatpush1.msra.mxu0 0.0
    %759 = vmatprep.subr.mxu0 0.0
    %760 = vmatpush1.msra.mxu0 0.0
    %761 = vmatprep.subr.mxu0 0.0
    %762 = vmatpush1.msra.mxu0 0.0
    %763 = vmatprep.subr.mxu0 0.0
    %764 = vmatpush1.msra.mxu0 0.0
    %765 = vmatprep.subr.mxu0 0.0
    %766 = vmatpush1.msra.mxu0 0.0
    %767 = vmatprep.mubr.f32.mxu0 0.0
    %768 = vmatmul.mubr.f32.gmra.mrb[0].mxu0 %v701
    %v769 = vpop.f32.mrb[0].mxu0
    %v770 = vadd.f32 0.0, %v769
    %v771 = vpop.f32.mrb[0].mxu0
    %772 = vdwg.mxu0
    %773 = vrot.lane.b32.xlu0 %v181, 56
    %v774 = vpop.permute.xlu0 %773
    %v777 = vsel %vm185, %v696, 0
    %779 = vmatprep.subr.mxu0 0.0
    %780 = vmatpush1.msra.mxu0 %v774
    %781 = vmatprep.subr.mxu0 0.0
    %782 = vmatpush1.msra.mxu0 0.0
    %783 = vmatprep.subr.mxu0 0.0
    %784 = vmatpush1.msra.mxu0 0.0
    %785 = vmatprep.subr.mxu0 0.0
    %786 = vmatpush1.msra.mxu0 0.0
    %787 = vmatprep.subr.mxu0 0.0
    %788 = vmatpush1.msra.mxu0 0.0
    %789 = vmatprep.subr.mxu0 0.0
    %790 = vmatpush1.msra.mxu0 0.0
    %791 = vmatprep.subr.mxu0 0.0
    %792 = vmatpush1.msra.mxu0 0.0
    %793 = vmatprep.subr.mxu0 0.0
    %794 = vmatpush1.msra.mxu0 0.0
    %795 = vmatprep.subr.mxu0 0.0
    %796 = vmatpush1.msra.mxu0 0.0
    %797 = vmatprep.subr.mxu0 0.0
    %798 = vmatpush1.msra.mxu0 0.0
    %799 = vmatprep.subr.mxu0 0.0
    %800 = vmatpush1.msra.mxu0 0.0
    %801 = vmatprep.subr.mxu0 0.0
    %802 = vmatpush1.msra.mxu0 0.0
    %803 = vmatprep.subr.mxu0 0.0
    %804 = vmatpush1.msra.mxu0 0.0
    %805 = vmatprep.subr.mxu0 0.0
    %806 = vmatpush1.msra.mxu0 0.0
    %807 = vmatprep.subr.mxu0 0.0
    %808 = vmatpush1.msra.mxu0 0.0
    %809 = vmatprep.subr.mxu0 0.0
    %810 = vmatpush1.msra.mxu0 0.0
    %811 = vmatprep.subr.mxu0 0.0
    %812 = vmatpush1.msra.mxu0 0.0
    %813 = vmatprep.subr.mxu0 0.0
    %814 = vmatpush1.msra.mxu0 0.0
    %815 = vmatprep.subr.mxu0 0.0
    %816 = vmatpush1.msra.mxu0 0.0
    %817 = vmatprep.subr.mxu0 0.0
    %818 = vmatpush1.msra.mxu0 0.0
    %819 = vmatprep.subr.mxu0 0.0
    %820 = vmatpush1.msra.mxu0 0.0
    %821 = vmatprep.subr.mxu0 0.0
    %822 = vmatpush1.msra.mxu0 0.0
    %823 = vmatprep.subr.mxu0 0.0
    %824 = vmatpush1.msra.mxu0 0.0
    %825 = vmatprep.subr.mxu0 0.0
    %826 = vmatpush1.msra.mxu0 0.0
    %827 = vmatprep.subr.mxu0 0.0
    %828 = vmatpush1.msra.mxu0 0.0
    %829 = vmatprep.subr.mxu0 0.0
    %830 = vmatpush1.msra.mxu0 0.0
    %831 = vmatprep.subr.mxu0 0.0
    %832 = vmatpush1.msra.mxu0 0.0
    %833 = vmatprep.subr.mxu0 0.0
    %834 = vmatpush1.msra.mxu0 0.0
    %835 = vmatprep.subr.mxu0 0.0
    %836 = vmatpush1.msra.mxu0 0.0
    %837 = vmatprep.subr.mxu0 0.0
    %838 = vmatpush1.msra.mxu0 0.0
    %839 = vmatprep.subr.mxu0 0.0
    %840 = vmatpush1.msra.mxu0 0.0
    %841 = vmatprep.subr.mxu0 0.0
    %842 = vmatpush1.msra.mxu0 0.0
    %843 = vmatprep.mubr.f32.mxu0 0.0
    %844 = vmatmul.mubr.f32.gmra.mrb[0].mxu0 %v777
    %v845 = vpop.f32.mrb[0].mxu0
    %v846 = vadd.f32 0.0, %v845
    %v847 = vpop.f32.mrb[0].mxu0
    %848 = vdwg.mxu0
    %849 = vrot.lane.b32.xlu0 %v160, 112
    %v850 = vpop.permute.xlu0 %849
    %851 = vrot.lane.b32.xlu0 %v170, 80
    %v852 = vpop.permute.xlu0 %851
    %v853 = vsel %vm185, %v850, 0
    %v855 = vsel %vm185, %v852, 0
    %857 = vmatprep.subr.mxu0 0.0
    %858 = vmatpush1.xpose.msra.mxu0 %v855
    %859 = vmatprep.subr.mxu0 0.0
    %860 = vmatpush1.xpose.msra.mxu0 0.0
    %861 = vmatprep.subr.mxu0 0.0
    %862 = vmatpush1.xpose.msra.mxu0 0.0
    %863 = vmatprep.subr.mxu0 0.0
    %864 = vmatpush1.xpose.msra.mxu0 0.0
    %865 = vmatprep.subr.mxu0 0.0
    %866 = vmatpush1.xpose.msra.mxu0 0.0
    %867 = vmatprep.subr.mxu0 0.0
    %868 = vmatpush1.xpose.msra.mxu0 0.0
    %869 = vmatprep.subr.mxu0 0.0
    %870 = vmatpush1.xpose.msra.mxu0 0.0
    %871 = vmatprep.subr.mxu0 0.0
    %872 = vmatpush1.xpose.msra.mxu0 0.0
    %873 = vmatprep.subr.mxu0 0.0
    %874 = vmatpush1.xpose.msra.mxu0 0.0
    %875 = vmatprep.subr.mxu0 0.0
    %876 = vmatpush1.xpose.msra.mxu0 0.0
    %877 = vmatprep.subr.mxu0 0.0
    %878 = vmatpush1.xpose.msra.mxu0 0.0
    %879 = vmatprep.subr.mxu0 0.0
    %880 = vmatpush1.xpose.msra.mxu0 0.0
    %881 = vmatprep.subr.mxu0 0.0
    %882 = vmatpush1.xpose.msra.mxu0 0.0
    %883 = vmatprep.subr.mxu0 0.0
    %884 = vmatpush1.xpose.msra.mxu0 0.0
    %885 = vmatprep.subr.mxu0 0.0
    %886 = vmatpush1.xpose.msra.mxu0 0.0
    %887 = vmatprep.subr.mxu0 0.0
    %888 = vmatpush1.xpose.msra.mxu0 0.0
    %889 = vmatprep.subr.mxu0 0.0
    %890 = vmatpush1.xpose.msra.mxu0 0.0
    %891 = vmatprep.subr.mxu0 0.0
    %892 = vmatpush1.xpose.msra.mxu0 0.0
    %893 = vmatprep.subr.mxu0 0.0
    %894 = vmatpush1.xpose.msra.mxu0 0.0
    %895 = vmatprep.subr.mxu0 0.0
    %896 = vmatpush1.xpose.msra.mxu0 0.0
    %897 = vmatprep.subr.mxu0 0.0
    %898 = vmatpush1.xpose.msra.mxu0 0.0
    %899 = vmatprep.subr.mxu0 0.0
    %900 = vmatpush1.xpose.msra.mxu0 0.0
    %901 = vmatprep.subr.mxu0 0.0
    %902 = vmatpush1.xpose.msra.mxu0 0.0
    %903 = vmatprep.subr.mxu0 0.0
    %904 = vmatpush1.xpose.msra.mxu0 0.0
    %905 = vmatprep.subr.mxu0 0.0
    %906 = vmatpush1.xpose.msra.mxu0 0.0
    %907 = vmatprep.subr.mxu0 0.0
    %908 = vmatpush1.xpose.msra.mxu0 0.0
    %909 = vmatprep.subr.mxu0 0.0
    %910 = vmatpush1.xpose.msra.mxu0 0.0
    %911 = vmatprep.subr.mxu0 0.0
    %912 = vmatpush1.xpose.msra.mxu0 0.0
    %913 = vmatprep.subr.mxu0 0.0
    %914 = vmatpush1.xpose.msra.mxu0 0.0
    %915 = vmatprep.subr.mxu0 0.0
    %916 = vmatpush1.xpose.msra.mxu0 0.0
    %917 = vmatprep.subr.mxu0 0.0
    %918 = vmatpush1.xpose.msra.mxu0 0.0
    %919 = vmatprep.subr.mxu0 0.0
    %920 = vmatpush1.xpose.msra.mxu0 0.0
    %921 = vmatprep.mubr.f32.mxu0 0.0
    %922 = vmatmul.mubr.f32.gmra.mrb[0].mxu0 %v853
    %v923 = vpop.f32.mrb[0].mxu0
    %v924 = vadd.f32 0.0, %v923
    %v925 = vpop.f32.mrb[0].mxu0
    %926 = vdwg.mxu0
    %927 = vrot.lane.b32.xlu0 %v161, 112
    %v928 = vpop.permute.xlu0 %927
    %929 = vrot.lane.b32.xlu0 %v171, 80
    %v930 = vpop.permute.xlu0 %929
    %v931 = vsel %vm185, %v928, 0
    %v933 = vsel %vm185, %v930, 0
    %935 = vmatprep.subr.mxu0 0.0
    %936 = vmatpush1.xpose.msra.mxu0 %v933
    %937 = vmatprep.subr.mxu0 0.0
    %938 = vmatpush1.xpose.msra.mxu0 0.0
    %939 = vmatprep.subr.mxu0 0.0
    %940 = vmatpush1.xpose.msra.mxu0 0.0
    %941 = vmatprep.subr.mxu0 0.0
    %942 = vmatpush1.xpose.msra.mxu0 0.0
    %943 = vmatprep.subr.mxu0 0.0
    %944 = vmatpush1.xpose.msra.mxu0 0.0
    %945 = vmatprep.subr.mxu0 0.0
    %946 = vmatpush1.xpose.msra.mxu0 0.0
    %947 = vmatprep.subr.mxu0 0.0
    %948 = vmatpush1.xpose.msra.mxu0 0.0
    %949 = vmatprep.subr.mxu0 0.0
    %950 = vmatpush1.xpose.msra.mxu0 0.0
    %951 = vmatprep.subr.mxu0 0.0
    %952 = vmatpush1.xpose.msra.mxu0 0.0
    %953 = vmatprep.subr.mxu0 0.0
    %954 = vmatpush1.xpose.msra.mxu0 0.0
    %955 = vmatprep.subr.mxu0 0.0
    %956 = vmatpush1.xpose.msra.mxu0 0.0
    %957 = vmatprep.subr.mxu0 0.0
    %958 = vmatpush1.xpose.msra.mxu0 0.0
    %959 = vmatprep.subr.mxu0 0.0
    %960 = vmatpush1.xpose.msra.mxu0 0.0
    %961 = vmatprep.subr.mxu0 0.0
    %962 = vmatpush1.xpose.msra.mxu0 0.0
    %963 = vmatprep.subr.mxu0 0.0
    %964 = vmatpush1.xpose.msra.mxu0 0.0
    %965 = vmatprep.subr.mxu0 0.0
    %966 = vmatpush1.xpose.msra.mxu0 0.0
    %967 = vmatprep.subr.mxu0 0.0
    %968 = vmatpush1.xpose.msra.mxu0 0.0
    %969 = vmatprep.subr.mxu0 0.0
    %970 = vmatpush1.xpose.msra.mxu0 0.0
    %971 = vmatprep.subr.mxu0 0.0
    %972 = vmatpush1.xpose.msra.mxu0 0.0
    %973 = vmatprep.subr.mxu0 0.0
    %974 = vmatpush1.xpose.msra.mxu0 0.0
    %975 = vmatprep.subr.mxu0 0.0
    %976 = vmatpush1.xpose.msra.mxu0 0.0
    %977 = vmatprep.subr.mxu0 0.0
    %978 = vmatpush1.xpose.msra.mxu0 0.0
    %979 = vmatprep.subr.mxu0 0.0
    %980 = vmatpush1.xpose.msra.mxu0 0.0
    %981 = vmatprep.subr.mxu0 0.0
    %982 = vmatpush1.xpose.msra.mxu0 0.0
    %983 = vmatprep.subr.mxu0 0.0
    %984 = vmatpush1.xpose.msra.mxu0 0.0
    %985 = vmatprep.subr.mxu0 0.0
    %986 = vmatpush1.xpose.msra.mxu0 0.0
    %987 = vmatprep.subr.mxu0 0.0
    %988 = vmatpush1.xpose.msra.mxu0 0.0
    %989 = vmatprep.subr.mxu0 0.0
    %990 = vmatpush1.xpose.msra.mxu0 0.0
    %991 = vmatprep.subr.mxu0 0.0
    %992 = vmatpush1.xpose.msra.mxu0 0.0
    %993 = vmatprep.subr.mxu0 0.0
    %994 = vmatpush1.xpose.msra.mxu0 0.0
    %995 = vmatprep.subr.mxu0 0.0
    %996 = vmatpush1.xpose.msra.mxu0 0.0
    %997 = vmatprep.subr.mxu0 0.0
    %998 = vmatpush1.xpose.msra.mxu0 0.0
    %999 = vmatprep.mubr.f32.mxu0 0.0
    %1000 = vmatmul.mubr.f32.gmra.mrb[0].mxu0 %v931
    %v1001 = vpop.f32.mrb[0].mxu0
    %v1002 = vadd.f32 0.0, %v1001
    %v1003 = vpop.f32.mrb[0].mxu0
    %1004 = vdwg.mxu0
    %v1005 = vmul.f32 %v924, 0.35355338
    %v1006 = vmul.f32 %v1002, 0.35355338
    %v1007 = vsel %vm185, %v1005, -inf
    %1008 = vmax.xlane.f32.xlu0 %v1007
    %v1009 = vpop.xlane.xlu0 %1008
    %v1010 = vsel %vm185, %v1006, -inf
    %1011 = vmax.xlane.f32.xlu0 %v1010
    %v1012 = vpop.xlane.xlu0 %1011
    %v1013 = vsub.f32 %v1005, %v1009
    %v1014 = vsub.f32 %v1006, %v1012
    %v1015 = vmul.f32 %v1013, 1.442695
    %v1016 = vpow.pop %v1015
    %v1017 = vmul.f32 %v1014, 1.442695
    %v1018 = vpow.pop %v1017
    %v1019 = vsel %vm185, %v1016, 0.0
    %1020 = vadd.xlane.f32.xlu0 %v1019
    %v1021 = vpop.xlane.xlu0 %1020
    %v1022 = vsel %vm185, %v1018, 0.0
    %1023 = vadd.xlane.f32.xlu0 %v1022
    %v1024 = vpop.xlane.xlu0 %1023
    %v1025 = vrcp.pop %v1021
    %v1026 = vrcp.pop %v1024
    %v1027 = vmul.f32 %v1016, %v1025
    %v1028 = vmul.f32 %v1018, %v1026
    %1029 = vrot.lane.b32.xlu0 %v180, 48
    %v1030 = vpop.permute.xlu0 %1029
    %v1033 = vsel %vm185, %v1027, 0
    %1035 = vmatprep.subr.mxu0 0.0
    %1036 = vmatpush1.msra.mxu0 %v1030
    %1037 = vmatprep.subr.mxu0 0.0
    %1038 = vmatpush1.msra.mxu0 0.0
    %1039 = vmatprep.subr.mxu0 0.0
    %1040 = vmatpush1.msra.mxu0 0.0
    %1041 = vmatprep.subr.mxu0 0.0
    %1042 = vmatpush1.msra.mxu0 0.0
    %1043 = vmatprep.subr.mxu0 0.0
    %1044 = vmatpush1.msra.mxu0 0.0
    %1045 = vmatprep.subr.mxu0 0.0
    %1046 = vmatpush1.msra.mxu0 0.0
    %1047 = vmatprep.subr.mxu0 0.0
    %1048 = vmatpush1.msra.mxu0 0.0
    %1049 = vmatprep.subr.mxu0 0.0
    %1050 = vmatpush1.msra.mxu0 0.0
    %1051 = vmatprep.subr.mxu0 0.0
    %1052 = vmatpush1.msra.mxu0 0.0
    %1053 = vmatprep.subr.mxu0 0.0
    %1054 = vmatpush1.msra.mxu0 0.0
    %1055 = vmatprep.subr.mxu0 0.0
    %1056 = vmatpush1.msra.mxu0 0.0
    %1057 = vmatprep.subr.mxu0 0.0
    %1058 = vmatpush1.msra.mxu0 0.0
    %1059 = vmatprep.subr.mxu0 0.0
    %1060 = vmatpush1.msra.mxu0 0.0
    %1061 = vmatprep.subr.mxu0 0.0
    %1062 = vmatpush1.msra.mxu0 0.0
    %1063 = vmatprep.subr.mxu0 0.0
    %1064 = vmatpush1.msra.mxu0 0.0
    %1065 = vmatprep.subr.mxu0 0.0
    %1066 = vmatpush1.msra.mxu0 0.0
    %1067 = vmatprep.subr.mxu0 0.0
    %1068 = vmatpush1.msra.mxu0 0.0
    %1069 = vmatprep.subr.mxu0 0.0
    %1070 = vmatpush1.msra.mxu0 0.0
    %1071 = vmatprep.subr.mxu0 0.0
    %1072 = vmatpush1.msra.mxu0 0.0
    %1073 = vmatprep.subr.mxu0 0.0
    %1074 = vmatpush1.msra.mxu0 0.0
    %1075 = vmatprep.subr.mxu0 0.0
    %1076 = vmatpush1.msra.mxu0 0.0
    %1077 = vmatprep.subr.mxu0 0.0
    %1078 = vmatpush1.msra.mxu0 0.0
    %1079 = vmatprep.subr.mxu0 0.0
    %1080 = vmatpush1.msra.mxu0 0.0
    %1081 = vmatprep.subr.mxu0 0.0
    %1082 = vmatpush1.msra.mxu0 0.0
    %1083 = vmatprep.subr.mxu0 0.0
    %1084 = vmatpush1.msra.mxu0 0.0
    %1085 = vmatprep.subr.mxu0 0.0
    %1086 = vmatpush1.msra.mxu0 0.0
    %1087 = vmatprep.subr.mxu0 0.0
    %1088 = vmatpush1.msra.mxu0 0.0
    %1089 = vmatprep.subr.mxu0 0.0
    %1090 = vmatpush1.msra.mxu0 0.0
    %1091 = vmatprep.subr.mxu0 0.0
    %1092 = vmatpush1.msra.mxu0 0.0
    %1093 = vmatprep.subr.mxu0 0.0
    %1094 = vmatpush1.msra.mxu0 0.0
    %1095 = vmatprep.subr.mxu0 0.0
    %1096 = vmatpush1.msra.mxu0 0.0
    %1097 = vmatprep.subr.mxu0 0.0
    %1098 = vmatpush1.msra.mxu0 0.0
    %1099 = vmatprep.mubr.f32.mxu0 0.0
    %1100 = vmatmul.mubr.f32.gmra.mrb[0].mxu0 %v1033
    %v1101 = vpop.f32.mrb[0].mxu0
    %v1102 = vadd.f32 0.0, %v1101
    %v1103 = vpop.f32.mrb[0].mxu0
    %1104 = vdwg.mxu0
    %1105 = vrot.lane.b32.xlu0 %v181, 48
    %v1106 = vpop.permute.xlu0 %1105
    %v1109 = vsel %vm185, %v1028, 0
    %1111 = vmatprep.subr.mxu0 0.0
    %1112 = vmatpush1.msra.mxu0 %v1106
    %1113 = vmatprep.subr.mxu0 0.0
    %1114 = vmatpush1.msra.mxu0 0.0
    %1115 = vmatprep.subr.mxu0 0.0
    %1116 = vmatpush1.msra.mxu0 0.0
    %1117 = vmatprep.subr.mxu0 0.0
    %1118 = vmatpush1.msra.mxu0 0.0
    %1119 = vmatprep.subr.mxu0 0.0
    %1120 = vmatpush1.msra.mxu0 0.0
    %1121 = vmatprep.subr.mxu0 0.0
    %1122 = vmatpush1.msra.mxu0 0.0
    %1123 = vmatprep.subr.mxu0 0.0
    %1124 = vmatpush1.msra.mxu0 0.0
    %1125 = vmatprep.subr.mxu0 0.0
    %1126 = vmatpush1.msra.mxu0 0.0
    %1127 = vmatprep.subr.mxu0 0.0
    %1128 = vmatpush1.msra.mxu0 0.0
    %1129 = vmatprep.subr.mxu0 0.0
    %1130 = vmatpush1.msra.mxu0 0.0
    %1131 = vmatprep.subr.mxu0 0.0
    %1132 = vmatpush1.msra.mxu0 0.0
    %1133 = vmatprep.subr.mxu0 0.0
    %1134 = vmatpush1.msra.mxu0 0.0
    %1135 = vmatprep.subr.mxu0 0.0
    %1136 = vmatpush1.msra.mxu0 0.0
    %1137 = vmatprep.subr.mxu0 0.0
    %1138 = vmatpush1.msra.mxu0 0.0
    %1139 = vmatprep.subr.mxu0 0.0
    %1140 = vmatpush1.msra.mxu0 0.0
    %1141 = vmatprep.subr.mxu0 0.0
    %1142 = vmatpush1.msra.mxu0 0.0
    %1143 = vmatprep.subr.mxu0 0.0
    %1144 = vmatpush1.msra.mxu0 0.0
    %1145 = vmatprep.subr.mxu0 0.0
    %1146 = vmatpush1.msra.mxu0 0.0
    %1147 = vmatprep.subr.mxu0 0.0
    %1148 = vmatpush1.msra.mxu0 0.0
    %1149 = vmatprep.subr.mxu0 0.0
    %1150 = vmatpush1.msra.mxu0 0.0
    %1151 = vmatprep.subr.mxu0 0.0
    %1152 = vmatpush1.msra.mxu0 0.0
    %1153 = vmatprep.subr.mxu0 0.0
    %1154 = vmatpush1.msra.mxu0 0.0
    %1155 = vmatprep.subr.mxu0 0.0
    %1156 = vmatpush1.msra.mxu0 0.0
    %1157 = vmatprep.subr.mxu0 0.0
    %1158 = vmatpush1.msra.mxu0 0.0
    %1159 = vmatprep.subr.mxu0 0.0
    %1160 = vmatpush1.msra.mxu0 0.0
    %1161 = vmatprep.subr.mxu0 0.0
    %1162 = vmatpush1.msra.mxu0 0.0
    %1163 = vmatprep.subr.mxu0 0.0
    %1164 = vmatpush1.msra.mxu0 0.0
    %1165 = vmatprep.subr.mxu0 0.0
    %1166 = vmatpush1.msra.mxu0 0.0
    %1167 = vmatprep.subr.mxu0 0.0
    %1168 = vmatpush1.msra.mxu0 0.0
    %1169 = vmatprep.subr.mxu0 0.0
    %1170 = vmatpush1.msra.mxu0 0.0
    %1171 = vmatprep.subr.mxu0 0.0
    %1172 = vmatpush1.msra.mxu0 0.0
    %1173 = vmatprep.subr.mxu0 0.0
    %1174 = vmatpush1.msra.mxu0 0.0
    %1175 = vmatprep.mubr.f32.mxu0 0.0
    %1176 = vmatmul.mubr.f32.gmra.mrb[0].mxu0 %v1109
    %v1177 = vpop.f32.mrb[0].mxu0
    %v1178 = vadd.f32 0.0, %v1177
    %v1179 = vpop.f32.mrb[0].mxu0
    %1180 = vdwg.mxu0
    %1181 = vrot.lane.b32.xlu0 %v160, 104
    %v1182 = vpop.permute.xlu0 %1181
    %1183 = vrot.lane.b32.xlu0 %v170, 72
    %v1184 = vpop.permute.xlu0 %1183
    %v1185 = vsel %vm185, %v1182, 0
    %v1187 = vsel %vm185, %v1184, 0
    %1189 = vmatprep.subr.mxu0 0.0
    %1190 = vmatpush1.xpose.msra.mxu0 %v1187
    %1191 = vmatprep.subr.mxu0 0.0
    %1192 = vmatpush1.xpose.msra.mxu0 0.0
    %1193 = vmatprep.subr.mxu0 0.0
    %1194 = vmatpush1.xpose.msra.mxu0 0.0
    %1195 = vmatprep.subr.mxu0 0.0
    %1196 = vmatpush1.xpose.msra.mxu0 0.0
    %1197 = vmatprep.subr.mxu0 0.0
    %1198 = vmatpush1.xpose.msra.mxu0 0.0
    %1199 = vmatprep.subr.mxu0 0.0
    %1200 = vmatpush1.xpose.msra.mxu0 0.0
    %1201 = vmatprep.subr.mxu0 0.0
    %1202 = vmatpush1.xpose.msra.mxu0 0.0
    %1203 = vmatprep.subr.mxu0 0.0
    %1204 = vmatpush1.xpose.msra.mxu0 0.0
    %1205 = vmatprep.subr.mxu0 0.0
    %1206 = vmatpush1.xpose.msra.mxu0 0.0
    %1207 = vmatprep.subr.mxu0 0.0
    %1208 = vmatpush1.xpose.msra.mxu0 0.0
    %1209 = vmatprep.subr.mxu0 0.0
    %1210 = vmatpush1.xpose.msra.mxu0 0.0
    %1211 = vmatprep.subr.mxu0 0.0
    %1212 = vmatpush1.xpose.msra.mxu0 0.0
    %1213 = vmatprep.subr.mxu0 0.0
    %1214 = vmatpush1.xpose.msra.mxu0 0.0
    %1215 = vmatprep.subr.mxu0 0.0
    %1216 = vmatpush1.xpose.msra.mxu0 0.0
    %1217 = vmatprep.subr.mxu0 0.0
    %1218 = vmatpush1.xpose.msra.mxu0 0.0
    %1219 = vmatprep.subr.mxu0 0.0
    %1220 = vmatpush1.xpose.msra.mxu0 0.0
    %1221 = vmatprep.subr.mxu0 0.0
    %1222 = vmatpush1.xpose.msra.mxu0 0.0
    %1223 = vmatprep.subr.mxu0 0.0
    %1224 = vmatpush1.xpose.msra.mxu0 0.0
    %1225 = vmatprep.subr.mxu0 0.0
    %1226 = vmatpush1.xpose.msra.mxu0 0.0
    %1227 = vmatprep.subr.mxu0 0.0
    %1228 = vmatpush1.xpose.msra.mxu0 0.0
    %1229 = vmatprep.subr.mxu0 0.0
    %1230 = vmatpush1.xpose.msra.mxu0 0.0
    %1231 = vmatprep.subr.mxu0 0.0
    %1232 = vmatpush1.xpose.msra.mxu0 0.0
    %1233 = vmatprep.subr.mxu0 0.0
    %1234 = vmatpush1.xpose.msra.mxu0 0.0
    %1235 = vmatprep.subr.mxu0 0.0
    %1236 = vmatpush1.xpose.msra.mxu0 0.0
    %1237 = vmatprep.subr.mxu0 0.0
    %1238 = vmatpush1.xpose.msra.mxu0 0.0
    %1239 = vmatprep.subr.mxu0 0.0
    %1240 = vmatpush1.xpose.msra.mxu0 0.0
    %1241 = vmatprep.subr.mxu0 0.0
    %1242 = vmatpush1.xpose.msra.mxu0 0.0
    %1243 = vmatprep.subr.mxu0 0.0
    %1244 = vmatpush1.xpose.msra.mxu0 0.0
    %1245 = vmatprep.subr.mxu0 0.0
    %1246 = vmatpush1.xpose.msra.mxu0 0.0
    %1247 = vmatprep.subr.mxu0 0.0
    %1248 = vmatpush1.xpose.msra.mxu0 0.0
    %1249 = vmatprep.subr.mxu0 0.0
    %1250 = vmatpush1.xpose.msra.mxu0 0.0
    %1251 = vmatprep.subr.mxu0 0.0
    %1252 = vmatpush1.xpose.msra.mxu0 0.0
    %1253 = vmatprep.mubr.f32.mxu0 0.0
    %1254 = vmatmul.mubr.f32.gmra.mrb[0].mxu0 %v1185
    %v1255 = vpop.f32.mrb[0].mxu0
    %v1256 = vadd.f32 0.0, %v1255
    %v1257 = vpop.f32.mrb[0].mxu0
    %1258 = vdwg.mxu0
    %1259 = vrot.lane.b32.xlu0 %v161, 104
    %v1260 = vpop.permute.xlu0 %1259
    %1261 = vrot.lane.b32.xlu0 %v171, 72
    %v1262 = vpop.permute.xlu0 %1261
    %v1263 = vsel %vm185, %v1260, 0
    %v1265 = vsel %vm185, %v1262, 0
    %1267 = vmatprep.subr.mxu0 0.0
    %1268 = vmatpush1.xpose.msra.mxu0 %v1265
    %1269 = vmatprep.subr.mxu0 0.0
    %1270 = vmatpush1.xpose.msra.mxu0 0.0
    %1271 = vmatprep.subr.mxu0 0.0
    %1272 = vmatpush1.xpose.msra.mxu0 0.0
    %1273 = vmatprep.subr.mxu0 0.0
    %1274 = vmatpush1.xpose.msra.mxu0 0.0
    %1275 = vmatprep.subr.mxu0 0.0
    %1276 = vmatpush1.xpose.msra.mxu0 0.0
    %1277 = vmatprep.subr.mxu0 0.0
    %1278 = vmatpush1.xpose.msra.mxu0 0.0
    %1279 = vmatprep.subr.mxu0 0.0
    %1280 = vmatpush1.xpose.msra.mxu0 0.0
    %1281 = vmatprep.subr.mxu0 0.0
    %1282 = vmatpush1.xpose.msra.mxu0 0.0
    %1283 = vmatprep.subr.mxu0 0.0
    %1284 = vmatpush1.xpose.msra.mxu0 0.0
    %1285 = vmatprep.subr.mxu0 0.0
    %1286 = vmatpush1.xpose.msra.mxu0 0.0
    %1287 = vmatprep.subr.mxu0 0.0
    %1288 = vmatpush1.xpose.msra.mxu0 0.0
    %1289 = vmatprep.subr.mxu0 0.0
    %1290 = vmatpush1.xpose.msra.mxu0 0.0
    %1291 = vmatprep.subr.mxu0 0.0
    %1292 = vmatpush1.xpose.msra.mxu0 0.0
    %1293 = vmatprep.subr.mxu0 0.0
    %1294 = vmatpush1.xpose.msra.mxu0 0.0
    %1295 = vmatprep.subr.mxu0 0.0
    %1296 = vmatpush1.xpose.msra.mxu0 0.0
    %1297 = vmatprep.subr.mxu0 0.0
    %1298 = vmatpush1.xpose.msra.mxu0 0.0
    %1299 = vmatprep.subr.mxu0 0.0
    %1300 = vmatpush1.xpose.msra.mxu0 0.0
    %1301 = vmatprep.subr.mxu0 0.0
    %1302 = vmatpush1.xpose.msra.mxu0 0.0
    %1303 = vmatprep.subr.mxu0 0.0
    %1304 = vmatpush1.xpose.msra.mxu0 0.0
    %1305 = vmatprep.subr.mxu0 0.0
    %1306 = vmatpush1.xpose.msra.mxu0 0.0
    %1307 = vmatprep.subr.mxu0 0.0
    %1308 = vmatpush1.xpose.msra.mxu0 0.0
    %1309 = vmatprep.subr.mxu0 0.0
    %1310 = vmatpush1.xpose.msra.mxu0 0.0
    %1311 = vmatprep.subr.mxu0 0.0
    %1312 = vmatpush1.xpose.msra.mxu0 0.0
    %1313 = vmatprep.subr.mxu0 0.0
    %1314 = vmatpush1.xpose.msra.mxu0 0.0
    %1315 = vmatprep.subr.mxu0 0.0
    %1316 = vmatpush1.xpose.msra.mxu0 0.0
    %1317 = vmatprep.subr.mxu0 0.0
    %1318 = vmatpush1.xpose.msra.mxu0 0.0
    %1319 = vmatprep.subr.mxu0 0.0
    %1320 = vmatpush1.xpose.msra.mxu0 0.0
    %1321 = vmatprep.subr.mxu0 0.0
    %1322 = vmatpush1.xpose.msra.mxu0 0.0
    %1323 = vmatprep.subr.mxu0 0.0
    %1324 = vmatpush1.xpose.msra.mxu0 0.0
    %1325 = vmatprep.subr.mxu0 0.0
    %1326 = vmatpush1.xpose.msra.mxu0 0.0
    %1327 = vmatprep.subr.mxu0 0.0
    %1328 = vmatpush1.xpose.msra.mxu0 0.0
    %1329 = vmatprep.subr.mxu0 0.0
    %1330 = vmatpush1.xpose.msra.mxu0 0.0
    %1331 = vmatprep.mubr.f32.mxu0 0.0
    %1332 = vmatmul.mubr.f32.gmra.mrb[0].mxu0 %v1263
    %v1333 = vpop.f32.mrb[0].mxu0
    %v1334 = vadd.f32 0.0, %v1333
    %v1335 = vpop.f32.mrb[0].mxu0
    %1336 = vdwg.mxu0
    %v1337 = vmul.f32 %v1256, 0.35355338
    %v1338 = vmul.f32 %v1334, 0.35355338
    %v1339 = vsel %vm185, %v1337, -inf
    %1340 = vmax.xlane.f32.xlu0 %v1339
    %v1341 = vpop.xlane.xlu0 %1340
    %v1342 = vsel %vm185, %v1338, -inf
    %1343 = vmax.xlane.f32.xlu0 %v1342
    %v1344 = vpop.xlane.xlu0 %1343
    %v1345 = vsub.f32 %v1337, %v1341
    %v1346 = vsub.f32 %v1338, %v1344
    %v1347 = vmul.f32 %v1345, 1.442695
    %v1348 = vpow.pop %v1347
    %v1349 = vmul.f32 %v1346, 1.442695
    %v1350 = vpow.pop %v1349
    %v1351 = vsel %vm185, %v1348, 0.0
    %1352 = vadd.xlane.f32.xlu0 %v1351
    %v1353 = vpop.xlane.xlu0 %1352
    %v1354 = vsel %vm185, %v1350, 0.0
    %1355 = vadd.xlane.f32.xlu0 %v1354
    %v1356 = vpop.xlane.xlu0 %1355
    %v1357 = vrcp.pop %v1353
    %v1358 = vrcp.pop %v1356
    %v1359 = vmul.f32 %v1348, %v1357
    %v1360 = vmul.f32 %v1350, %v1358
    %1361 = vrot.lane.b32.xlu0 %v180, 40
    %v1362 = vpop.permute.xlu0 %1361
    %v1365 = vsel %vm185, %v1359, 0
    %1367 = vmatprep.subr.mxu0 0.0
    %1368 = vmatpush1.msra.mxu0 %v1362
    %1369 = vmatprep.subr.mxu0 0.0
    %1370 = vmatpush1.msra.mxu0 0.0
    %1371 = vmatprep.subr.mxu0 0.0
    %1372 = vmatpush1.msra.mxu0 0.0
    %1373 = vmatprep.subr.mxu0 0.0
    %1374 = vmatpush1.msra.mxu0 0.0
    %1375 = vmatprep.subr.mxu0 0.0
    %1376 = vmatpush1.msra.mxu0 0.0
    %1377 = vmatprep.subr.mxu0 0.0
    %1378 = vmatpush1.msra.mxu0 0.0
    %1379 = vmatprep.subr.mxu0 0.0
    %1380 = vmatpush1.msra.mxu0 0.0
    %1381 = vmatprep.subr.mxu0 0.0
    %1382 = vmatpush1.msra.mxu0 0.0
    %1383 = vmatprep.subr.mxu0 0.0
    %1384 = vmatpush1.msra.mxu0 0.0
    %1385 = vmatprep.subr.mxu0 0.0
    %1386 = vmatpush1.msra.mxu0 0.0
    %1387 = vmatprep.subr.mxu0 0.0
    %1388 = vmatpush1.msra.mxu0 0.0
    %1389 = vmatprep.subr.mxu0 0.0
    %1390 = vmatpush1.msra.mxu0 0.0
    %1391 = vmatprep.subr.mxu0 0.0
    %1392 = vmatpush1.msra.mxu0 0.0
    %1393 = vmatprep.subr.mxu0 0.0
    %1394 = vmatpush1.msra.mxu0 0.0
    %1395 = vmatprep.subr.mxu0 0.0
    %1396 = vmatpush1.msra.mxu0 0.0
    %1397 = vmatprep.subr.mxu0 0.0
    %1398 = vmatpush1.msra.mxu0 0.0
    %1399 = vmatprep.subr.mxu0 0.0
    %1400 = vmatpush1.msra.mxu0 0.0
    %1401 = vmatprep.subr.mxu0 0.0
    %1402 = vmatpush1.msra.mxu0 0.0
    %1403 = vmatprep.subr.mxu0 0.0
    %1404 = vmatpush1.msra.mxu0 0.0
    %1405 = vmatprep.subr.mxu0 0.0
    %1406 = vmatpush1.msra.mxu0 0.0
    %1407 = vmatprep.subr.mxu0 0.0
    %1408 = vmatpush1.msra.mxu0 0.0
    %1409 = vmatprep.subr.mxu0 0.0
    %1410 = vmatpush1.msra.mxu0 0.0
    %1411 = vmatprep.subr.mxu0 0.0
    %1412 = vmatpush1.msra.mxu0 0.0
    %1413 = vmatprep.subr.mxu0 0.0
    %1414 = vmatpush1.msra.mxu0 0.0
    %1415 = vmatprep.subr.mxu0 0.0
    %1416 = vmatpush1.msra.mxu0 0.0
    %1417 = vmatprep.subr.mxu0 0.0
    %1418 = vmatpush1.msra.mxu0 0.0
    %1419 = vmatprep.subr.mxu0 0.0
    %1420 = vmatpush1.msra.mxu0 0.0
    %1421 = vmatprep.subr.mxu0 0.0
    %1422 = vmatpush1.msra.mxu0 0.0
    %1423 = vmatprep.subr.mxu0 0.0
    %1424 = vmatpush1.msra.mxu0 0.0
    %1425 = vmatprep.subr.mxu0 0.0
    %1426 = vmatpush1.msra.mxu0 0.0
    %1427 = vmatprep.subr.mxu0 0.0
    %1428 = vmatpush1.msra.mxu0 0.0
    %1429 = vmatprep.subr.mxu0 0.0
    %1430 = vmatpush1.msra.mxu0 0.0
    %1431 = vmatprep.mubr.f32.mxu0 0.0
    %1432 = vmatmul.mubr.f32.gmra.mrb[0].mxu0 %v1365
    %v1433 = vpop.f32.mrb[0].mxu0
    %v1434 = vadd.f32 0.0, %v1433
    %v1435 = vpop.f32.mrb[0].mxu0
    %1436 = vdwg.mxu0
    %1437 = vrot.lane.b32.xlu0 %v181, 40
    %v1438 = vpop.permute.xlu0 %1437
    %v1441 = vsel %vm185, %v1360, 0
    %1443 = vmatprep.subr.mxu0 0.0
    %1444 = vmatpush1.msra.mxu0 %v1438
    %1445 = vmatprep.subr.mxu0 0.0
    %1446 = vmatpush1.msra.mxu0 0.0
    %1447 = vmatprep.subr.mxu0 0.0
    %1448 = vmatpush1.msra.mxu0 0.0
    %1449 = vmatprep.subr.mxu0 0.0
    %1450 = vmatpush1.msra.mxu0 0.0
    %1451 = vmatprep.subr.mxu0 0.0
    %1452 = vmatpush1.msra.mxu0 0.0
    %1453 = vmatprep.subr.mxu0 0.0
    %1454 = vmatpush1.msra.mxu0 0.0
    %1455 = vmatprep.subr.mxu0 0.0
    %1456 = vmatpush1.msra.mxu0 0.0
    %1457 = vmatprep.subr.mxu0 0.0
    %1458 = vmatpush1.msra.mxu0 0.0
    %1459 = vmatprep.subr.mxu0 0.0
    %1460 = vmatpush1.msra.mxu0 0.0
    %1461 = vmatprep.subr.mxu0 0.0
    %1462 = vmatpush1.msra.mxu0 0.0
    %1463 = vmatprep.subr.mxu0 0.0
    %1464 = vmatpush1.msra.mxu0 0.0
    %1465 = vmatprep.subr.mxu0 0.0
    %1466 = vmatpush1.msra.mxu0 0.0
    %1467 = vmatprep.subr.mxu0 0.0
    %1468 = vmatpush1.msra.mxu0 0.0
    %1469 = vmatprep.subr.mxu0 0.0
    %1470 = vmatpush1.msra.mxu0 0.0
    %1471 = vmatprep.subr.mxu0 0.0
    %1472 = vmatpush1.msra.mxu0 0.0
    %1473 = vmatprep.subr.mxu0 0.0
    %1474 = vmatpush1.msra.mxu0 0.0
    %1475 = vmatprep.subr.mxu0 0.0
    %1476 = vmatpush1.msra.mxu0 0.0
    %1477 = vmatprep.subr.mxu0 0.0
    %1478 = vmatpush1.msra.mxu0 0.0
    %1479 = vmatprep.subr.mxu0 0.0
    %1480 = vmatpush1.msra.mxu0 0.0
    %1481 = vmatprep.subr.mxu0 0.0
    %1482 = vmatpush1.msra.mxu0 0.0
    %1483 = vmatprep.subr.mxu0 0.0
    %1484 = vmatpush1.msra.mxu0 0.0
    %1485 = vmatprep.subr.mxu0 0.0
    %1486 = vmatpush1.msra.mxu0 0.0
    %1487 = vmatprep.subr.mxu0 0.0
    %1488 = vmatpush1.msra.mxu0 0.0
    %1489 = vmatprep.subr.mxu0 0.0
    %1490 = vmatpush1.msra.mxu0 0.0
    %1491 = vmatprep.subr.mxu0 0.0
    %1492 = vmatpush1.msra.mxu0 0.0
    %1493 = vmatprep.subr.mxu0 0.0
    %1494 = vmatpush1.msra.mxu0 0.0
    %1495 = vmatprep.subr.mxu0 0.0
    %1496 = vmatpush1.msra.mxu0 0.0
    %1497 = vmatprep.subr.mxu0 0.0
    %1498 = vmatpush1.msra.mxu0 0.0
    %1499 = vmatprep.subr.mxu0 0.0
    %1500 = vmatpush1.msra.mxu0 0.0
    %1501 = vmatprep.subr.mxu0 0.0
    %1502 = vmatpush1.msra.mxu0 0.0
    %1503 = vmatprep.subr.mxu0 0.0
    %1504 = vmatpush1.msra.mxu0 0.0
    %1505 = vmatprep.subr.mxu0 0.0
    %1506 = vmatpush1.msra.mxu0 0.0
    %1507 = vmatprep.mubr.f32.mxu0 0.0
    %1508 = vmatmul.mubr.f32.gmra.mrb[0].mxu0 %v1441
    %v1509 = vpop.f32.mrb[0].mxu0
    %v1510 = vadd.f32 0.0, %v1509
    %v1511 = vpop.f32.mrb[0].mxu0
    %1512 = vdwg.mxu0
    %1515 = vrot.lane.b32.xlu0 %v770, 8
    %v1516 = vpop.permute.xlu0 %1515
    %1517 = vrot.lane.b32.xlu0 %v846, 8
    %v1518 = vpop.permute.xlu0 %1517
    %1523 = vrot.lane.b32.xlu0 %v1102, 16
    %v1524 = vpop.permute.xlu0 %1523
    %1525 = vrot.lane.b32.xlu0 %v1178, 16
    %v1526 = vpop.permute.xlu0 %1525
    %1531 = vrot.lane.b32.xlu0 %v1434, 24
    %v1532 = vpop.permute.xlu0 %1531
    %1533 = vrot.lane.b32.xlu0 %v1510, 24
    %v1534 = vpop.permute.xlu0 %1533
    %v1537 = vsel %vm185, %v437, %v1516
    %v1538 = vsel %vm185, %v514, %v1518
    %vm1539 = vcmask 130048
    %v1540 = vsel %vm1539, %v1537, %v1524
    %v1541 = vsel %vm1539, %v1538, %v1526
    %vm1542 = vcmask 195584
    %v1543 = vsel %vm1542, %v1540, %v1532
    %v1544 = vsel %vm1542, %v1541, %v1534
    %v1545 = vld [vmem:[%s2] sm:$0xff]
    %v1546 = vld [vmem:[%s2 + $0x8] sm:$0xff]
    %v1547 = vld [vmem:[%s2 + $0x10] sm:$0xff]
    %v1548 = vld [vmem:[%s2 + $0x18] sm:$0xff]
    %v1549 = vlaneseq
    %v1550 = vshrl.u32 %v1549, 7
    %v1551 = vsub.s32 5, %v1550
    %v1552 = vrot.slane %v29, %v1551
    %v1554 = vsel %vm31, %v1543, 0
    %v1557 = vsel %vm31, %v1544, 0
    %1559 = vmatprep.subr.mxu0 0.0
    %1560 = vmatpush1.msra.mxu0 %v1545
    %1561 = vmatprep.subr.mxu0 0.0
    %1562 = vmatpush1.msra.mxu0 %v1546
    %1563 = vmatprep.subr.mxu0 0.0
    %1564 = vmatpush1.msra.mxu0 %v1547
    %1565 = vmatprep.subr.mxu0 0.0
    %1566 = vmatpush1.msra.mxu0 %v1548
    %1567 = vmatprep.subr.mxu0 0.0
    %1568 = vmatpush1.msra.mxu0 0.0
    %1569 = vmatprep.subr.mxu0 0.0
    %1570 = vmatpush1.msra.mxu0 0.0
    %1571 = vmatprep.subr.mxu0 0.0
    %1572 = vmatpush1.msra.mxu0 0.0
    %1573 = vmatprep.subr.mxu0 0.0
    %1574 = vmatpush1.msra.mxu0 0.0
    %1575 = vmatprep.subr.mxu0 0.0
    %1576 = vmatpush1.msra.mxu0 0.0
    %1577 = vmatprep.subr.mxu0 0.0
    %1578 = vmatpush1.msra.mxu0 0.0
    %1579 = vmatprep.subr.mxu0 0.0
    %1580 = vmatpush1.msra.mxu0 0.0
    %1581 = vmatprep.subr.mxu0 0.0
    %1582 = vmatpush1.msra.mxu0 0.0
    %1583 = vmatprep.subr.mxu0 0.0
    %1584 = vmatpush1.msra.mxu0 0.0
    %1585 = vmatprep.subr.mxu0 0.0
    %1586 = vmatpush1.msra.mxu0 0.0
    %1587 = vmatprep.subr.mxu0 0.0
    %1588 = vmatpush1.msra.mxu0 0.0
    %1589 = vmatprep.subr.mxu0 0.0
    %1590 = vmatpush1.msra.mxu0 0.0
    %1591 = vmatprep.subr.mxu0 0.0
    %1592 = vmatpush1.msra.mxu0 0.0
    %1593 = vmatprep.subr.mxu0 0.0
    %1594 = vmatpush1.msra.mxu0 0.0
    %1595 = vmatprep.subr.mxu0 0.0
    %1596 = vmatpush1.msra.mxu0 0.0
    %1597 = vmatprep.subr.mxu0 0.0
    %1598 = vmatpush1.msra.mxu0 0.0
    %1599 = vmatprep.subr.mxu0 0.0
    %1600 = vmatpush1.msra.mxu0 0.0
    %1601 = vmatprep.subr.mxu0 0.0
    %1602 = vmatpush1.msra.mxu0 0.0
    %1603 = vmatprep.subr.mxu0 0.0
    %1604 = vmatpush1.msra.mxu0 0.0
    %1605 = vmatprep.subr.mxu0 0.0
    %1606 = vmatpush1.msra.mxu0 0.0
    %1607 = vmatprep.subr.mxu0 0.0
    %1608 = vmatpush1.msra.mxu0 0.0
    %1609 = vmatprep.subr.mxu0 0.0
    %1610 = vmatpush1.msra.mxu0 0.0
    %1611 = vmatprep.subr.mxu0 0.0
    %1612 = vmatpush1.msra.mxu0 0.0
    %1613 = vmatprep.subr.mxu0 0.0
    %1614 = vmatpush1.msra.mxu0 0.0
    %1615 = vmatprep.subr.mxu0 0.0
    %1616 = vmatpush1.msra.mxu0 0.0
    %1617 = vmatprep.subr.mxu0 0.0
    %1618 = vmatpush1.msra.mxu0 0.0
    %1619 = vmatprep.subr.mxu0 0.0
    %1620 = vmatpush1.msra.mxu0 0.0
    %1621 = vmatprep.subr.mxu0 0.0
    %1622 = vmatpush1.msra.mxu0 0.0
    %1623 = vmatprep.mubr.f32.mxu0 0.0
    %1624 = vmatmul.mubr.f32.gmra.mrb[0].mxu0 %v1554
    %v1625 = vpop.f32.mrb[0].mxu0
    %v1626 = vadd.f32 %v1552, %v1625
    %v1627 = vpop.f32.mrb[0].mxu0
    %1628 = vmatprep.mubr.f32.mxu0 0.0
    %1629 = vmatmul.mubr.f32.gmra.mrb[0].mxu0 %v1557
    %v1630 = vpop.f32.mrb[0].mxu0
    %v1631 = vadd.f32 %v1552, %v1630
    %v1632 = vpop.f32.mrb[0].mxu0
    %1633 = vdwg.mxu0
    %v1634 = vadd.f32 %v27, %v1626
    %v1635 = vadd.f32 %v28, %v1631
    %v1636 = vsel %vm31, %v1634, 0.0
    %1637 = vadd.xlane.f32.xlu0 %v1636
    %v1638 = vpop.xlane.xlu0 %1637
    %v1639 = vsel %vm31, %v1635, 0.0
    %1640 = vadd.xlane.f32.xlu0 %v1639
    %v1641 = vpop.xlane.xlu0 %1640
    %v1642 = vmul.f32 %v1638, %v38
    %v1643 = vmul.f32 %v1641, %v38
    %v1644 = vsub.f32 %v1634, %v1642
    %v1645 = vsub.f32 %v1635, %v1643
    %v1646 = vmul.f32 %v1644, %v1644
    %v1647 = vmul.f32 %v1645, %v1645
    %v1648 = vsel %vm31, %v1646, 0.0
    %1649 = vadd.xlane.f32.xlu0 %v1648
    %v1650 = vpop.xlane.xlu0 %1649
    %v1651 = vsel %vm31, %v1647, 0.0
    %1652 = vadd.xlane.f32.xlu0 %v1651
    %v1653 = vpop.xlane.xlu0 %1652
    %v1654 = vmul.f32 %v1650, %v38
    %v1655 = vmul.f32 %v1653, %v38
    %v1656 = vadd.f32 %v1654, 1e-05
    %v1657 = vadd.f32 %v1655, 1e-05
    %v1658 = vrsqrt.pop %v1656
    %v1659 = vrsqrt.pop %v1657
    %v1660 = vmul.f32 %v1644, %v1658
    %v1661 = vmul.f32 %v1645, %v1659
    %v1662 = vlaneseq
    %v1663 = vshrl.u32 %v1662, 7
    %v1664 = vsub.s32 6, %v1663
    %v1665 = vrot.slane %v29, %v1664
    %v1666 = vmul.f32 %v1660, %v1665
    %v1667 = vmul.f32 %v1661, %v1665
    %v1668 = vlaneseq
    %v1669 = vshrl.u32 %v1668, 7
    %v1670 = vsub.s32 7, %v1669
    %v1671 = vrot.slane %v29, %v1670
    %v1672 = vadd.f32 %v1666, %v1671
    %v1673 = vadd.f32 %v1667, %v1671
    %v1674 = vld [vmem:[%s3] sm:$0xff]
    %v1675 = vld [vmem:[%s3 + $0x8] sm:$0xff]
    %v1676 = vld [vmem:[%s3 + $0x10] sm:$0xff]
    %v1677 = vld [vmem:[%s3 + $0x18] sm:$0xff]
    %v1678 = vld [vmem:[%s6] sm:$0x1]
    %v1680 = vlaneseq
    %v1681 = vshrl.u32 %v1680, 7
    %v1682 = vsub.s32 0, %v1681
    %v1683 = vrot.slane %v1678, %v1682
    %v1686 = vsel %vm31, %v1672, 0
    %v1689 = vsel %vm31, %v1673, 0
    %1691 = vmatprep.subr.mxu0 0.0
    %1692 = vmatpush1.msra.mxu0 %v1674
    %1693 = vmatprep.subr.mxu0 0.0
    %1694 = vmatpush1.msra.mxu0 %v1675
    %1695 = vmatprep.subr.mxu0 0.0
    %1696 = vmatpush1.msra.mxu0 %v1676
    %1697 = vmatprep.subr.mxu0 0.0
    %1698 = vmatpush1.msra.mxu0 %v1677
    %1699 = vmatprep.subr.mxu0 0.0
    %1700 = vmatpush1.msra.mxu0 0.0
    %1701 = vmatprep.subr.mxu0 0.0
    %1702 = vmatpush1.msra.mxu0 0.0
    %1703 = vmatprep.subr.mxu0 0.0
    %1704 = vmatpush1.msra.mxu0 0.0
    %1705 = vmatprep.subr.mxu0 0.0
    %1706 = vmatpush1.msra.mxu0 0.0
    %1707 = vmatprep.subr.mxu0 0.0
    %1708 = vmatpush1.msra.mxu0 0.0
    %1709 = vmatprep.subr.mxu0 0.0
    %1710 = vmatpush1.msra.mxu0 0.0
    %1711 = vmatprep.subr.mxu0 0.0
    %1712 = vmatpush1.msra.mxu0 0.0
    %1713 = vmatprep.subr.mxu0 0.0
    %1714 = vmatpush1.msra.mxu0 0.0
    %1715 = vmatprep.subr.mxu0 0.0
    %1716 = vmatpush1.msra.mxu0 0.0
    %1717 = vmatprep.subr.mxu0 0.0
    %1718 = vmatpush1.msra.mxu0 0.0
    %1719 = vmatprep.subr.mxu0 0.0
    %1720 = vmatpush1.msra.mxu0 0.0
    %1721 = vmatprep.subr.mxu0 0.0
    %1722 = vmatpush1.msra.mxu0 0.0
    %1723 = vmatprep.subr.mxu0 0.0
    %1724 = vmatpush1.msra.mxu0 0.0
    %1725 = vmatprep.subr.mxu0 0.0
    %1726 = vmatpush1.msra.mxu0 0.0
    %1727 = vmatprep.subr.mxu0 0.0
    %1728 = vmatpush1.msra.mxu0 0.0
    %1729 = vmatprep.subr.mxu0 0.0
    %1730 = vmatpush1.msra.mxu0 0.0
    %1731 = vmatprep.subr.mxu0 0.0
    %1732 = vmatpush1.msra.mxu0 0.0
    %1733 = vmatprep.subr.mxu0 0.0
    %1734 = vmatpush1.msra.mxu0 0.0
    %1735 = vmatprep.subr.mxu0 0.0
    %1736 = vmatpush1.msra.mxu0 0.0
    %1737 = vmatprep.subr.mxu0 0.0
    %1738 = vmatpush1.msra.mxu0 0.0
    %1739 = vmatprep.subr.mxu0 0.0
    %1740 = vmatpush1.msra.mxu0 0.0
    %1741 = vmatprep.subr.mxu0 0.0
    %1742 = vmatpush1.msra.mxu0 0.0
    %1743 = vmatprep.subr.mxu0 0.0
    %1744 = vmatpush1.msra.mxu0 0.0
    %1745 = vmatprep.subr.mxu0 0.0
    %1746 = vmatpush1.msra.mxu0 0.0
    %1747 = vmatprep.subr.mxu0 0.0
    %1748 = vmatpush1.msra.mxu0 0.0
    %1749 = vmatprep.subr.mxu0 0.0
    %1750 = vmatpush1.msra.mxu0 0.0
    %1751 = vmatprep.subr.mxu0 0.0
    %1752 = vmatpush1.msra.mxu0 0.0
    %1753 = vmatprep.subr.mxu0 0.0
    %1754 = vmatpush1.msra.mxu0 0.0
    %1755 = vmatprep.mubr.f32.mxu0 0.0
    %1756 = vmatmul.mubr.f32.gmra.mrb[0].mxu0 %v1686
    %v1757 = vpop.f32.mrb[0].mxu0
    %v1758 = vadd.f32 %v1683, %v1757
    %v1759 = vpop.f32.mrb[0].mxu0
    %1760 = vmatprep.mubr.f32.mxu0 0.0
    %1761 = vmatmul.mubr.f32.gmra.mrb[0].mxu0 %v1689
    %v1762 = vpop.f32.mrb[0].mxu0
    %v1763 = vadd.f32 %v1683, %v1762
    %v1764 = vpop.f32.mrb[0].mxu0
    %1765 = vdwg.mxu0
    %v1766 = vmul.f32 %v1758, 0.5
    %v1767 = vmul.f32 %v1763, 0.5
    %v1768 = vrcp.pop 1.4142135
    %v1769 = vmul.f32 %v1758, %v1768
    %v1770 = vmul.f32 %v1763, %v1768
    %v1771 = verf.f32.pop %v1769
    %v1772 = verf.f32.pop %v1770
    %v1773 = vadd.f32 %v1771, 1.0
    %v1774 = vadd.f32 %v1772, 1.0
    %v1775 = vmul.f32 %v1766, %v1773
    %v1776 = vmul.f32 %v1767, %v1774
    %v1777 = vld [vmem:[%s4] sm:$0xff]
    %v1778 = vld [vmem:[%s4 + $0x8] sm:$0xff]
    %v1779 = vld [vmem:[%s4 + $0x10] sm:$0xff]
    %v1780 = vld [vmem:[%s4 + $0x18] sm:$0xff]
    %v1781 = vld [vmem:[%s4 + $0x20] sm:$0xff]
    %v1782 = vld [vmem:[%s4 + $0x28] sm:$0xff]
    %v1783 = vld [vmem:[%s4 + $0x30] sm:$0xff]
    %v1784 = vld [vmem:[%s4 + $0x38] sm:$0xff]
    %v1785 = vld [vmem:[%s4 + $0x40] sm:$0xff]
    %v1786 = vld [vmem:[%s4 + $0x48] sm:$0xff]
    %v1787 = vld [vmem:[%s4 + $0x50] sm:$0xff]
    %v1788 = vld [vmem:[%s4 + $0x58] sm:$0xff]
    %v1789 = vld [vmem:[%s4 + $0x60] sm:$0xff]
    %v1790 = vld [vmem:[%s4 + $0x68] sm:$0xff]
    %v1791 = vld [vmem:[%s4 + $0x70] sm:$0xff]
    %v1792 = vld [vmem:[%s4 + $0x78] sm:$0xff]
    %v1793 = vlaneseq
    %v1794 = vshrl.u32 %v1793, 7
    %v1795 = vsub.s32 0, %v1794
    %v1796 = vrot.slane %v30, %v1795
    %1797 = vmatprep.subr.mxu0 0.0
    %1798 = vmatpush1.msra.mxu0 %v1777
    %1799 = vmatprep.subr.mxu0 0.0
    %1800 = vmatpush1.msra.mxu0 %v1778
    %1801 = vmatprep.subr.mxu0 0.0
    %1802 = vmatpush1.msra.mxu0 %v1779
    %1803 = vmatprep.subr.mxu0 0.0
    %1804 = vmatpush1.msra.mxu0 %v1780
    %1805 = vmatprep.subr.mxu0 0.0
    %1806 = vmatpush1.msra.mxu0 %v1781
    %1807 = vmatprep.subr.mxu0 0.0
    %1808 = vmatpush1.msra.mxu0 %v1782
    %1809 = vmatprep.subr.mxu0 0.0
    %1810 = vmatpush1.msra.mxu0 %v1783
    %1811 = vmatprep.subr.mxu0 0.0
    %1812 = vmatpush1.msra.mxu0 %v1784
    %1813 = vmatprep.subr.mxu0 0.0
    %1814 = vmatpush1.msra.mxu0 %v1785
    %1815 = vmatprep.subr.mxu0 0.0
    %1816 = vmatpush1.msra.mxu0 %v1786
    %1817 = vmatprep.subr.mxu0 0.0
    %1818 = vmatpush1.msra.mxu0 %v1787
    %1819 = vmatprep.subr.mxu0 0.0
    %1820 = vmatpush1.msra.mxu0 %v1788
    %1821 = vmatprep.subr.mxu0 0.0
    %1822 = vmatpush1.msra.mxu0 %v1789
    %1823 = vmatprep.subr.mxu0 0.0
    %1824 = vmatpush1.msra.mxu0 %v1790
    %1825 = vmatprep.subr.mxu0 0.0
    %1826 = vmatpush1.msra.mxu0 %v1791
    %1827 = vmatprep.subr.mxu0 0.0
    %1828 = vmatpush1.msra.mxu0 %v1792
    %1829 = vmatprep.subr.mxu0 0.0
    %1830 = vmatpush1.msra.mxu0 0.0
    %1831 = vmatprep.subr.mxu0 0.0
    %1832 = vmatpush1.msra.mxu0 0.0
    %1833 = vmatprep.subr.mxu0 0.0
    %1834 = vmatpush1.msra.mxu0 0.0
    %1835 = vmatprep.subr.mxu0 0.0
    %1836 = vmatpush1.msra.mxu0 0.0
    %1837 = vmatprep.subr.mxu0 0.0
    %1838 = vmatpush1.msra.mxu0 0.0
    %1839 = vmatprep.subr.mxu0 0.0
    %1840 = vmatpush1.msra.mxu0 0.0
    %1841 = vmatprep.subr.mxu0 0.0
    %1842 = vmatpush1.msra.mxu0 0.0
    %1843 = vmatprep.subr.mxu0 0.0
    %1844 = vmatpush1.msra.mxu0 0.0
    %1845 = vmatprep.subr.mxu0 0.0
    %1846 = vmatpush1.msra.mxu0 0.0
    %1847 = vmatprep.subr.mxu0 0.0
    %1848 = vmatpush1.msra.mxu0 0.0
    %1849 = vmatprep.subr.mxu0 0.0
    %1850 = vmatpush1.msra.mxu0 0.0
    %1851 = vmatprep.subr.mxu0 0.0
    %1852 = vmatpush1.msra.mxu0 0.0
    %1853 = vmatprep.subr.mxu0 0.0
    %1854 = vmatpush1.msra.mxu0 0.0
    %1855 = vmatprep.subr.mxu0 0.0
    %1856 = vmatpush1.msra.mxu0 0.0
    %1857 = vmatprep.subr.mxu0 0.0
    %1858 = vmatpush1.msra.mxu0 0.0
    %1859 = vmatprep.subr.mxu0 0.0
    %1860 = vmatpush1.msra.mxu0 0.0
    %1861 = vmatprep.mubr.f32.mxu0 0.0
    %1862 = vmatmul.mubr.f32.gmra.mrb[0].mxu0 %v1775
    %v1863 = vpop.f32.mrb[0].mxu0
    %v1864 = vadd.f32 %v1796, %v1863
    %v1865 = vpop.f32.mrb[0].mxu0
    %1866 = vmatprep.mubr.f32.mxu0 0.0
    %1867 = vmatmul.mubr.f32.gmra.mrb[0].mxu0 %v1776
    %v1868 = vpop.f32.mrb[0].mxu0
    %v1869 = vadd.f32 %v1796, %v1868
    %v1870 = vpop.f32.mrb[0].mxu0
    %1871 = vdwg.mxu0
    %v1872 = vadd.f32 %v1634, %v1864
    %v1873 = vadd.f32 %v1635, %v1869
    %1874 = vst.msk [vmem:[#allocation2] sm:$0xff] %vm31, %v1872
    %1875 = vst.msk [vmem:[#allocation2 + $0x8] sm:$0xff] %vm31, %v1873
    // Predicated region
    $region30: #{tpu_custom_call.1} parent=1 // pred_check
      _
    $region31: #{tpu_custom_call.1} parent=1 // pred_check_branch
      %1877 = sbr.rel (0) target = $region33
    $region32: #{tpu_custom_call.1} parent=1 // pred_region
      %s1879 = ssub.s32 256, 256
      %1880 = vsyncadd [#allocation3], %s1879
      %s1881 = sshll.u32 [#allocation2], 4
      %s1882 = int_to_ptr.vmem [resolvable:$true] %s1881
      %1887 = dma.vmem_to_hbm [thread:$0]  %s1882, 256, %s7, [#allocation3], 128, 128, 8
    $region33: #{tpu_custom_call.1} parent=1 // pred_fallthru
      _
    // Predicated region
    $region34: #{tpu_custom_call.1} parent=1 // pred_check
      _
    $region35: #{tpu_custom_call.1} parent=1 // pred_check_branch
      %1889 = sbr.rel (0) target = $region37
    $region36: #{tpu_custom_call.1} parent=1 // pred_region
      %1890 = dma.done [#allocation3], 256
    $region37: #{tpu_custom_call.1} parent=1 // pred_fallthru
      _
    %1891 = vsyncpa [#allocation3], 1

</llo_original>
